<compile_context>
chip_gen: v7x
topology: tpu7x:2x2x1
jax: 0.10.0
libtpu: 0.0.40
codegen_flags: <defaults>
</compile_context>

<pallas_src>
import functools
import math

import jax
import jax.numpy as jnp
from jax.experimental import pallas as pl
from jax.experimental.pallas import tpu as pltpu


# ----------------------------------------------------------------------------
# Helpers
# ----------------------------------------------------------------------------
def _layer_norm(x, gamma, beta, eps=1e-5):
    # x: (T, H) f32; gamma/beta: (1, H). Matches nn.LayerNorm (biased variance).
    mean = jnp.mean(x, axis=-1, keepdims=True)
    var = jnp.mean((x - mean) ** 2, axis=-1, keepdims=True)
    return (x - mean) * jax.lax.rsqrt(var + eps) * gamma + beta


def _pick_seq_tile(seq_len):
    # Query-tile size: full sequence when small, else a 128/256-row tile so the
    # S x S score block stays VMEM-friendly (v7x has only 64 MiB VMEM).
    if seq_len <= 256:
        return seq_len
    for cand in (256, 128, 64, 32, 16, 8):
        if seq_len % cand == 0:
            return cand
    return seq_len


# ----------------------------------------------------------------------------
# Kernels
# ----------------------------------------------------------------------------
def embed_kernel(tok_ref, pos_ref, out_ref, *, scale):
    # Only used when there are zero encoder layers (otherwise embed is fused
    # into the first layer kernel).
    out_ref[0] = tok_ref[0] * scale + pos_ref[...]


def encoder_layer_kernel(*refs, n_heads, head_dim, seq_tile, embed_scale):
    """One full encoder layer (optionally with the token/pos embed fused in).

    Grid is (batch, num_query_tiles). K/V are computed from the full sequence;
    only the query tile's rows are produced per grid step.
    """
    if embed_scale is not None:
        (tok_ref, pos_ref, mask_ref,
         wqkv_ref, bqkv_ref, wo_ref, bo_ref,
         ln1_g_ref, ln1_b_ref,
         w1_ref, b1_ref, w2_ref, b2_ref,
         ln2_g_ref, ln2_b_ref, out_ref) = refs
        # Fused embedding: tok * sqrt(H) + pos (dropout = identity).
        x_full = tok_ref[0] * embed_scale + pos_ref[...]          # (S, H) f32
    else:
        (src_ref, mask_ref,
         wqkv_ref, bqkv_ref, wo_ref, bo_ref,
         ln1_g_ref, ln1_b_ref,
         w1_ref, b1_ref, w2_ref, b2_ref,
         ln2_g_ref, ln2_b_ref, out_ref) = refs
        x_full = src_ref[0]                                        # (S, H) f32

    S, H = x_full.shape
    TQ = seq_tile
    nh, d = n_heads, head_dim
    inv_scale = 1.0 / math.sqrt(float(d))

    # Hoisted additive mask bias (computed once, not per head): (1, S) f32.
    mask = mask_ref[0]
    bias = jnp.where(mask == 0, -1e10, 0.0).astype(jnp.float32)

    # --- fused QKV projection: one (S,H) x (H,3H) bf16 MXU matmul, f32 acc ---
    xb = x_full.astype(jnp.bfloat16)
    qkv = jnp.dot(xb, wqkv_ref[...],
                  preferred_element_type=jnp.float32) + bqkv_ref[...]   # (S, 3H)
    q_full = qkv[:, :H]
    k = qkv[:, H:2 * H]
    v = qkv[:, 2 * H:]

    # Query tile rows (residual input + Q). Scale folded into Q once.
    if TQ == S:
        x_q = x_full
        q = q_full * inv_scale
    else:
        row0 = pl.program_id(1) * TQ
        x_q = jax.lax.dynamic_slice_in_dim(x_full, row0, TQ, axis=0)
        q = jax.lax.dynamic_slice_in_dim(q_full, row0, TQ, axis=0) * inv_scale

    # --- head-batched attention (single 3-D contraction per step) ------------
    # (For real models head_dim is a multiple of 128, so these slices are
    #  tile-aligned; heads land on the leading axis, head_dim stays on lanes.)
    qh = jnp.stack([q[:, h * d:(h + 1) * d] for h in range(nh)], axis=0)  # (nh,TQ,d)
    kh = jnp.stack([k[:, h * d:(h + 1) * d] for h in range(nh)], axis=0)  # (nh,S,d)
    vh = jnp.stack([v[:, h * d:(h + 1) * d] for h in range(nh)], axis=0)  # (nh,S,d)

    energy = jnp.einsum('hqd,hkd->hqk',
                        qh.astype(jnp.bfloat16), kh.astype(jnp.bfloat16),
                        preferred_element_type=jnp.float32)               # (nh,TQ,S)
    energy = energy + bias[None]                                          # masked_fill

    m = jnp.max(energy, axis=-1, keepdims=True)
    e = jnp.exp(energy - m)
    denom = jnp.sum(e, axis=-1, keepdims=True)
    attn = e * pl.reciprocal(denom, approx=True)                          # softmax

    ctx = jnp.einsum('hqk,hkd->hqd',
                     attn.astype(jnp.bfloat16), vh.astype(jnp.bfloat16),
                     preferred_element_type=jnp.float32)                  # (nh,TQ,d)
    attn_cat = jnp.concatenate([ctx[h] for h in range(nh)], axis=-1)      # (TQ,H)

    attn_out = jnp.dot(attn_cat.astype(jnp.bfloat16), wo_ref[...],
                       preferred_element_type=jnp.float32) + bo_ref[...]

    # --- residual + layernorm 1 (f32 stats) ----------------------------------
    x1 = _layer_norm(x_q + attn_out, ln1_g_ref[...], ln1_b_ref[...])

    # --- position-wise feedforward (bf16 matmuls, f32 acc) --------------------
    hdn = jnp.maximum(
        jnp.dot(x1.astype(jnp.bfloat16), w1_ref[...],
                preferred_element_type=jnp.float32) + b1_ref[...],
        0.0)
    ff = jnp.dot(hdn.astype(jnp.bfloat16), w2_ref[...],
                 preferred_element_type=jnp.float32) + b2_ref[...]

    # --- residual + layernorm 2 ----------------------------------------------
    out_ref[0] = _layer_norm(x1 + ff, ln2_g_ref[...], ln2_b_ref[...])


# ----------------------------------------------------------------------------
# Wrappers
# ----------------------------------------------------------------------------
def embed_forward(tok_gathered, pos_slice, hid_dim):
    B, S, H = tok_gathered.shape
    return pl.pallas_call(
        functools.partial(embed_kernel, scale=math.sqrt(float(hid_dim))),
        out_shape=jax.ShapeDtypeStruct((B, S, H), jnp.float32),
        grid_spec=pltpu.PrefetchScalarGridSpec(
            num_scalar_prefetch=0,
            grid=(B,),
            in_specs=[pl.BlockSpec((1, S, H), lambda b: (b, 0, 0)),
                      pl.BlockSpec((S, H), lambda b: (0, 0))],
            out_specs=pl.BlockSpec((1, S, H), lambda b: (b, 0, 0))),
        compiler_params=pltpu.CompilerParams(dimension_semantics=("parallel",)),
    )(tok_gathered, pos_slice)


def encoder_layer_forward(x, mask, lp, *, n_heads, seq_tile,
                          pos=None, embed_scale=None):
    B, S, H = x.shape
    head_dim = H // n_heads
    pf = lp["w1"].shape[1]
    TQ = seq_tile
    NT = S // TQ

    def full(shape):
        return pl.BlockSpec(shape, lambda b, t: (0,) * len(shape))

    # Full-sequence source block (needed for K/V); query tile is sliced in-kernel.
    in_specs = [pl.BlockSpec((1, S, H), lambda b, t: (b, 0, 0))]
    inputs = [x]
    if embed_scale is not None:
        in_specs.append(pl.BlockSpec((S, H), lambda b, t: (0, 0)))   # pos emb
        inputs.append(pos)
    in_specs += [
        pl.BlockSpec((1, 1, S), lambda b, t: (b, 0, 0)),             # mask
        full((H, 3 * H)), full((1, 3 * H)),                          # fused qkv
        full((H, H)), full((1, H)),                                  # fc_o
        full((1, H)), full((1, H)),                                  # layernorm 1
        full((H, pf)), full((1, pf)),                                # fc_1
        full((pf, H)), full((1, H)),                                 # fc_2
        full((1, H)), full((1, H)),                                  # layernorm 2
    ]
    inputs += [mask, lp["wqkv"], lp["bqkv"], lp["wo"], lp["bo"],
               lp["ln1_g"], lp["ln1_b"], lp["w1"], lp["b1"],
               lp["w2"], lp["b2"], lp["ln2_g"], lp["ln2_b"]]

    kernel = functools.partial(encoder_layer_kernel, n_heads=n_heads,
                               head_dim=head_dim, seq_tile=TQ,
                               embed_scale=embed_scale)
    return pl.pallas_call(
        kernel,
        out_shape=jax.ShapeDtypeStruct((B, S, H), jnp.float32),
        grid_spec=pltpu.PrefetchScalarGridSpec(
            num_scalar_prefetch=0,
            grid=(B, NT),
            in_specs=in_specs,
            out_specs=pl.BlockSpec((1, TQ, H), lambda b, t: (b, t, 0))),
        compiler_params=pltpu.CompilerParams(
            dimension_semantics=("parallel", "parallel")),
    )(*inputs)


def encoder_forward(src_tokens, src_mask, params, *, n_heads):
    """src_tokens: [B, S] int32 token ids; src_mask: [B, 1, S] int32."""
    B, S = src_tokens.shape
    H = params["tok_emb"].shape[1]
    # Embedding gathers: plain-JAX glue.
    tok_g = jnp.take(params["tok_emb"], src_tokens, axis=0)   # (B, S, H)
    pos_g = params["pos_emb"][:S]                             # (S, H)

    layers = params["layers"]
    if not layers:
        return embed_forward(tok_g, pos_g, H)

    seq_tile = _pick_seq_tile(S)
    x = tok_g
    for li, lp in enumerate(layers):
        if li == 0:
            # Embedding scale + positional add fused into the first layer.
            x = encoder_layer_forward(x, src_mask, lp, n_heads=n_heads,
                                      seq_tile=seq_tile, pos=pos_g,
                                      embed_scale=math.sqrt(float(H)))
        else:
            x = encoder_layer_forward(x, src_mask, lp, n_heads=n_heads,
                                      seq_tile=seq_tile)
    # TODO(synk): cross-pallas_call prefetch of layer i+1 weights (P10 future)
    # would hide the per-layer weight DMA; omitted for simplicity.
    return x


# ----------------------------------------------------------------------------
# Deterministic parameter construction (synthetic, matches module shapes)
# ----------------------------------------------------------------------------
def make_params(key, *, input_dim, hid_dim, n_layers, pf_dim, max_length):
    def nrm(k, shape, s=0.02, dtype=jnp.float32):
        return (s * jax.random.normal(k, shape)).astype(dtype)

    bf16 = jnp.bfloat16
    keys = jax.random.split(key, 2 + max(n_layers, 1))
    params = {
        "tok_emb": nrm(keys[0], (input_dim, hid_dim), 1.0),
        "pos_emb": nrm(keys[1], (max_length, hid_dim), 1.0),
        "layers": [],
    }
    for li in range(n_layers):
        lk = jax.random.split(keys[2 + li], 12)
        wq = nrm(lk[0], (hid_dim, hid_dim)); bq = nrm(lk[1], (1, hid_dim))
        wk = nrm(lk[2], (hid_dim, hid_dim)); bk = nrm(lk[3], (1, hid_dim))
        wv = nrm(lk[4], (hid_dim, hid_dim)); bv = nrm(lk[5], (1, hid_dim))
        lp = {
            # Fused QKV weight, columns ordered [Q | K | V]; matmul weights bf16.
            "wqkv": jnp.concatenate([wq, wk, wv], axis=1).astype(bf16),
            "bqkv": jnp.concatenate([bq, bk, bv], axis=1),
            "wo": nrm(lk[6], (hid_dim, hid_dim), dtype=bf16),
            "bo": nrm(lk[7], (1, hid_dim)),
            "ln1_g": jnp.ones((1, hid_dim), jnp.float32),
            "ln1_b": jnp.zeros((1, hid_dim), jnp.float32),
            "w1": nrm(lk[8], (hid_dim, pf_dim), dtype=bf16),
            "b1": nrm(lk[9], (1, pf_dim)),
            "w2": nrm(lk[10], (pf_dim, hid_dim), dtype=bf16),
            "b2": nrm(lk[11], (1, hid_dim)),
            "ln2_g": jnp.ones((1, hid_dim), jnp.float32),
            "ln2_b": jnp.zeros((1, hid_dim), jnp.float32),
        }
        params["layers"].append(lp)
    return params


# ----------------------------------------------------------------------------
if __name__ == "__main__":
    INPUT_DIM, HID_DIM, N_LAYERS, N_HEADS = 50, 32, 2, 4
    PF_DIM, MAX_LEN = 64, 16
    B, S = 2, 8

    key = jax.random.PRNGKey(0)
    pkey, skey = jax.random.split(key)
    params = make_params(pkey, input_dim=INPUT_DIM, hid_dim=HID_DIM,
                         n_layers=N_LAYERS, pf_dim=PF_DIM, max_length=MAX_LEN)

    src = jax.random.randint(skey, (B, S), 0, INPUT_DIM, dtype=jnp.int32)
    # mask: [B, 1, S]; 1 = attendable, 0 = padding (last 2 positions of batch 1)
    src_mask = jnp.ones((B, 1, S), jnp.int32)
    src_mask = src_mask.at[1, 0, 6:].set(0)

    out = encoder_forward(src, src_mask, params, n_heads=N_HEADS)
    jax.block_until_ready(out)
    assert out.shape == (B, S, HID_DIM) and out.dtype == jnp.float32
    print("KERNEL_OK")
</pallas_src>

<mosaic_0001>
module attributes {stable_mosaic.version = 11 : i64} {
  func.func @encoder_layer_kernel(%arg0: i32, %arg1: i32, %arg2: memref<1x8x32xf32, #tpu.memory_space<vmem>>, %arg3: memref<8x32xf32, #tpu.memory_space<vmem>>, %arg4: memref<1x1x8xi32, #tpu.memory_space<vmem>>, %arg5: memref<32x96xbf16, #tpu.memory_space<vmem>>, %arg6: memref<1x96xf32, #tpu.memory_space<vmem>>, %arg7: memref<32x32xbf16, #tpu.memory_space<vmem>>, %arg8: memref<1x32xf32, #tpu.memory_space<vmem>>, %arg9: memref<1x32xf32, #tpu.memory_space<vmem>>, %arg10: memref<1x32xf32, #tpu.memory_space<vmem>>, %arg11: memref<32x64xbf16, #tpu.memory_space<vmem>>, %arg12: memref<1x64xf32, #tpu.memory_space<vmem>>, %arg13: memref<64x32xbf16, #tpu.memory_space<vmem>>, %arg14: memref<1x32xf32, #tpu.memory_space<vmem>>, %arg15: memref<1x32xf32, #tpu.memory_space<vmem>>, %arg16: memref<1x32xf32, #tpu.memory_space<vmem>>, %arg17: memref<1x8x32xf32, #tpu.memory_space<vmem>>) attributes {dimension_semantics = [#tpu.dimension_semantics<parallel>, #tpu.dimension_semantics<parallel>], iteration_bounds = array<i64: 2, 1>, scalar_prefetch = 0 : i64, scratch_operands = 0 : i64, tpu.core_type = #tpu.core_type<tc>, window_params = [{transform_indices = @transform_0, window_bounds = array<i64: 1, 8, 32>}, {pipeline_mode = #tpu.pipeline_mode<synchronous>, transform_indices = @transform_1, window_bounds = array<i64: 8, 32>}, {transform_indices = @transform_2, window_bounds = array<i64: 1, 1, 8>}, {pipeline_mode = #tpu.pipeline_mode<synchronous>, transform_indices = @transform_3, window_bounds = array<i64: 32, 96>}, {pipeline_mode = #tpu.pipeline_mode<synchronous>, transform_indices = @transform_4, window_bounds = array<i64: 1, 96>}, {pipeline_mode = #tpu.pipeline_mode<synchronous>, transform_indices = @transform_5, window_bounds = array<i64: 32, 32>}, {pipeline_mode = #tpu.pipeline_mode<synchronous>, transform_indices = @transform_6, window_bounds = array<i64: 1, 32>}, {pipeline_mode = #tpu.pipeline_mode<synchronous>, transform_indices = @transform_7, window_bounds = array<i64: 1, 32>}, {pipeline_mode = #tpu.pipeline_mode<synchronous>, transform_indices = @transform_8, window_bounds = array<i64: 1, 32>}, {pipeline_mode = #tpu.pipeline_mode<synchronous>, transform_indices = @transform_9, window_bounds = array<i64: 32, 64>}, {pipeline_mode = #tpu.pipeline_mode<synchronous>, transform_indices = @transform_10, window_bounds = array<i64: 1, 64>}, {pipeline_mode = #tpu.pipeline_mode<synchronous>, transform_indices = @transform_11, window_bounds = array<i64: 64, 32>}, {pipeline_mode = #tpu.pipeline_mode<synchronous>, transform_indices = @transform_12, window_bounds = array<i64: 1, 32>}, {pipeline_mode = #tpu.pipeline_mode<synchronous>, transform_indices = @transform_13, window_bounds = array<i64: 1, 32>}, {pipeline_mode = #tpu.pipeline_mode<synchronous>, transform_indices = @transform_14, window_bounds = array<i64: 1, 32>}, {transform_indices = @transform_15, window_bounds = array<i64: 1, 8, 32>}]} {
    %c0 = arith.constant 0 : index
    %c0_0 = arith.constant 0 : index
    %c0_1 = arith.constant 0 : index
    %0 = vector.load %arg2[%c0, %c0_0, %c0_1] : memref<1x8x32xf32, #tpu.memory_space<vmem>>, vector<1x8x32xf32>
    %1 = vector.shape_cast %0 : vector<1x8x32xf32> to vector<8x32xf32>
    %cst = arith.constant 5.65685415 : f32
    %2 = vector.broadcast %cst : f32 to vector<8x32xf32>
    %3 = arith.mulf %1, %2 : vector<8x32xf32>
    %c0_2 = arith.constant 0 : index
    %c0_3 = arith.constant 0 : index
    %4 = vector.load %arg3[%c0_2, %c0_3] : memref<8x32xf32, #tpu.memory_space<vmem>>, vector<8x32xf32>
    %5 = arith.addf %3, %4 : vector<8x32xf32>
    %c0_4 = arith.constant 0 : index
    %c0_5 = arith.constant 0 : index
    %c0_6 = arith.constant 0 : index
    %6 = vector.load %arg4[%c0_4, %c0_5, %c0_6] : memref<1x1x8xi32, #tpu.memory_space<vmem>>, vector<1x1x8xi32>
    %7 = vector.shape_cast %6 : vector<1x1x8xi32> to vector<1x8xi32>
    %c0_i32 = arith.constant 0 : i32
    %8 = vector.broadcast %c0_i32 : i32 to vector<1x8xi32>
    %9 = arith.cmpi eq, %7, %8 : vector<1x8xi32>
    %cst_7 = arith.constant -1.000000e+10 : f32
    %cst_8 = arith.constant 0.000000e+00 : f32
    %10 = vector.broadcast %cst_7 : f32 to vector<1x8xf32>
    %11 = vector.broadcast %cst_8 : f32 to vector<1x8xf32>
    %12 = arith.select %9, %10, %11 : vector<1x8xi1>, vector<1x8xf32>
    %13 = arith.truncf %5 : vector<8x32xf32> to vector<8x32xbf16>
    %c0_9 = arith.constant 0 : index
    %c0_10 = arith.constant 0 : index
    %14 = vector.load %arg5[%c0_9, %c0_10] : memref<32x96xbf16, #tpu.memory_space<vmem>>, vector<32x96xbf16>
    %cst_11 = arith.constant dense<0.000000e+00> : vector<8x96xf32>
    %15 = tpu.matmul %13, %14, %cst_11 {dimension_numbers = #tpu.dot_dimension_numbers<[1], [0], [0], [1], [0, 0, 1, 1], [], []>} : vector<8x32xbf16>, vector<32x96xbf16>, vector<8x96xf32> -> vector<8x96xf32>
    %c0_12 = arith.constant 0 : index
    %c0_13 = arith.constant 0 : index
    %16 = vector.load %arg6[%c0_12, %c0_13] : memref<1x96xf32, #tpu.memory_space<vmem>>, vector<1x96xf32>
    %17 = vector.broadcast %16 : vector<1x96xf32> to vector<8x96xf32>
    %18 = arith.addf %15, %17 : vector<8x96xf32>
    %19 = vector.extract_strided_slice %18 {offsets = [0, 0], sizes = [8, 32], strides = [1, 1]} : vector<8x96xf32> to vector<8x32xf32>
    %20 = vector.extract_strided_slice %18 {offsets = [0, 32], sizes = [8, 32], strides = [1, 1]} : vector<8x96xf32> to vector<8x32xf32>
    %21 = vector.extract_strided_slice %18 {offsets = [0, 64], sizes = [8, 32], strides = [1, 1]} : vector<8x96xf32> to vector<8x32xf32>
    %cst_14 = arith.constant 0.353553385 : f32
    %22 = vector.broadcast %cst_14 : f32 to vector<8x32xf32>
    %23 = arith.mulf %19, %22 : vector<8x32xf32>
    %24 = vector.extract_strided_slice %23 {offsets = [0, 0], sizes = [8, 8], strides = [1, 1]} : vector<8x32xf32> to vector<8x8xf32>
    %25 = vector.extract_strided_slice %23 {offsets = [0, 8], sizes = [8, 8], strides = [1, 1]} : vector<8x32xf32> to vector<8x8xf32>
    %26 = vector.extract_strided_slice %23 {offsets = [0, 16], sizes = [8, 8], strides = [1, 1]} : vector<8x32xf32> to vector<8x8xf32>
    %27 = vector.extract_strided_slice %23 {offsets = [0, 24], sizes = [8, 8], strides = [1, 1]} : vector<8x32xf32> to vector<8x8xf32>
    %28 = vector.shape_cast %24 : vector<8x8xf32> to vector<1x8x8xf32>
    %29 = vector.shape_cast %25 : vector<8x8xf32> to vector<1x8x8xf32>
    %30 = vector.shape_cast %26 : vector<8x8xf32> to vector<1x8x8xf32>
    %31 = vector.shape_cast %27 : vector<8x8xf32> to vector<1x8x8xf32>
    %32 = tpu.concatenate %28, %29, %30, %31 in 0 : vector<1x8x8xf32>, vector<1x8x8xf32>, vector<1x8x8xf32>, vector<1x8x8xf32> -> vector<4x8x8xf32>
    %33 = vector.extract_strided_slice %20 {offsets = [0, 0], sizes = [8, 8], strides = [1, 1]} : vector<8x32xf32> to vector<8x8xf32>
    %34 = vector.extract_strided_slice %20 {offsets = [0, 8], sizes = [8, 8], strides = [1, 1]} : vector<8x32xf32> to vector<8x8xf32>
    %35 = vector.extract_strided_slice %20 {offsets = [0, 16], sizes = [8, 8], strides = [1, 1]} : vector<8x32xf32> to vector<8x8xf32>
    %36 = vector.extract_strided_slice %20 {offsets = [0, 24], sizes = [8, 8], strides = [1, 1]} : vector<8x32xf32> to vector<8x8xf32>
    %37 = vector.shape_cast %33 : vector<8x8xf32> to vector<1x8x8xf32>
    %38 = vector.shape_cast %34 : vector<8x8xf32> to vector<1x8x8xf32>
    %39 = vector.shape_cast %35 : vector<8x8xf32> to vector<1x8x8xf32>
    %40 = vector.shape_cast %36 : vector<8x8xf32> to vector<1x8x8xf32>
    %41 = tpu.concatenate %37, %38, %39, %40 in 0 : vector<1x8x8xf32>, vector<1x8x8xf32>, vector<1x8x8xf32>, vector<1x8x8xf32> -> vector<4x8x8xf32>
    %42 = vector.extract_strided_slice %21 {offsets = [0, 0], sizes = [8, 8], strides = [1, 1]} : vector<8x32xf32> to vector<8x8xf32>
    %43 = vector.extract_strided_slice %21 {offsets = [0, 8], sizes = [8, 8], strides = [1, 1]} : vector<8x32xf32> to vector<8x8xf32>
    %44 = vector.extract_strided_slice %21 {offsets = [0, 16], sizes = [8, 8], strides = [1, 1]} : vector<8x32xf32> to vector<8x8xf32>
    %45 = vector.extract_strided_slice %21 {offsets = [0, 24], sizes = [8, 8], strides = [1, 1]} : vector<8x32xf32> to vector<8x8xf32>
    %46 = vector.shape_cast %42 : vector<8x8xf32> to vector<1x8x8xf32>
    %47 = vector.shape_cast %43 : vector<8x8xf32> to vector<1x8x8xf32>
    %48 = vector.shape_cast %44 : vector<8x8xf32> to vector<1x8x8xf32>
    %49 = vector.shape_cast %45 : vector<8x8xf32> to vector<1x8x8xf32>
    %50 = tpu.concatenate %46, %47, %48, %49 in 0 : vector<1x8x8xf32>, vector<1x8x8xf32>, vector<1x8x8xf32>, vector<1x8x8xf32> -> vector<4x8x8xf32>
    %51 = arith.truncf %32 : vector<4x8x8xf32> to vector<4x8x8xbf16>
    %52 = arith.truncf %41 : vector<4x8x8xf32> to vector<4x8x8xbf16>
    "tpu.trace_start"() <{level = 10 : i32, message = "hqd,hkd->hqk"}> : () -> ()
    %cst_15 = arith.constant dense<0.000000e+00> : vector<4x8x8xf32>
    %53 = tpu.matmul %51, %52, %cst_15 {dimension_numbers = #tpu.dot_dimension_numbers<[2], [2], [1], [1], [0, 0, 0, 1, 1, 1], [0], [0]>} : vector<4x8x8xbf16>, vector<4x8x8xbf16>, vector<4x8x8xf32> -> vector<4x8x8xf32>
    "tpu.trace_stop"() : () -> ()
    %54 = vector.shape_cast %12 : vector<1x8xf32> to vector<1x1x8xf32>
    %55 = vector.broadcast %54 : vector<1x1x8xf32> to vector<4x8x8xf32>
    %56 = arith.addf %53, %55 : vector<4x8x8xf32>
    %cst_16 = arith.constant dense<0xFF800000> : vector<4x8xf32>
    %57 = vector.multi_reduction <maximumf>, %56, %cst_16 [2] : vector<4x8x8xf32> to vector<4x8xf32>
    %58 = vector.shape_cast %57 : vector<4x8xf32> to vector<4x8x1xf32>
    %59 = vector.broadcast %58 : vector<4x8x1xf32> to vector<4x8x8xf32>
    %60 = arith.subf %56, %59 : vector<4x8x8xf32>
    %61 = math.exp %60 : vector<4x8x8xf32>
    %cst_17 = arith.constant dense<0.000000e+00> : vector<4x8xf32>
    %62 = vector.multi_reduction <add>, %61, %cst_17 [2] : vector<4x8x8xf32> to vector<4x8xf32>
    %63 = vector.shape_cast %62 : vector<4x8xf32> to vector<4x8x1xf32>
    %64 = tpu.reciprocal %63 {approx = true} : vector<4x8x1xf32> -> vector<4x8x1xf32>
    %65 = vector.broadcast %64 : vector<4x8x1xf32> to vector<4x8x8xf32>
    %66 = arith.mulf %61, %65 : vector<4x8x8xf32>
    %67 = arith.truncf %66 : vector<4x8x8xf32> to vector<4x8x8xbf16>
    %68 = arith.truncf %50 : vector<4x8x8xf32> to vector<4x8x8xbf16>
    "tpu.trace_start"() <{level = 10 : i32, message = "hqk,hkd->hqd"}> : () -> ()
    %cst_18 = arith.constant dense<0.000000e+00> : vector<4x8x8xf32>
    %69 = tpu.matmul %67, %68, %cst_18 {dimension_numbers = #tpu.dot_dimension_numbers<[2], [1], [1], [2], [0, 0, 0, 1, 1, 2], [0], [0]>} : vector<4x8x8xbf16>, vector<4x8x8xbf16>, vector<4x8x8xf32> -> vector<4x8x8xf32>
    "tpu.trace_stop"() : () -> ()
    %70 = vector.extract_strided_slice %69 {offsets = [0, 0, 0], sizes = [1, 8, 8], strides = [1, 1, 1]} : vector<4x8x8xf32> to vector<1x8x8xf32>
    %71 = vector.shape_cast %70 : vector<1x8x8xf32> to vector<8x8xf32>
    %72 = vector.extract_strided_slice %69 {offsets = [1, 0, 0], sizes = [1, 8, 8], strides = [1, 1, 1]} : vector<4x8x8xf32> to vector<1x8x8xf32>
    %73 = vector.shape_cast %72 : vector<1x8x8xf32> to vector<8x8xf32>
    %74 = vector.extract_strided_slice %69 {offsets = [2, 0, 0], sizes = [1, 8, 8], strides = [1, 1, 1]} : vector<4x8x8xf32> to vector<1x8x8xf32>
    %75 = vector.shape_cast %74 : vector<1x8x8xf32> to vector<8x8xf32>
    %76 = vector.extract_strided_slice %69 {offsets = [3, 0, 0], sizes = [1, 8, 8], strides = [1, 1, 1]} : vector<4x8x8xf32> to vector<1x8x8xf32>
    %77 = vector.shape_cast %76 : vector<1x8x8xf32> to vector<8x8xf32>
    %78 = tpu.concatenate %71, %73, %75, %77 in 1 : vector<8x8xf32>, vector<8x8xf32>, vector<8x8xf32>, vector<8x8xf32> -> vector<8x32xf32>
    %79 = arith.truncf %78 : vector<8x32xf32> to vector<8x32xbf16>
    %c0_19 = arith.constant 0 : index
    %c0_20 = arith.constant 0 : index
    %80 = vector.load %arg7[%c0_19, %c0_20] : memref<32x32xbf16, #tpu.memory_space<vmem>>, vector<32x32xbf16>
    %cst_21 = arith.constant dense<0.000000e+00> : vector<8x32xf32>
    %81 = tpu.matmul %79, %80, %cst_21 {dimension_numbers = #tpu.dot_dimension_numbers<[1], [0], [0], [1], [0, 0, 1, 1], [], []>} : vector<8x32xbf16>, vector<32x32xbf16>, vector<8x32xf32> -> vector<8x32xf32>
    %c0_22 = arith.constant 0 : index
    %c0_23 = arith.constant 0 : index
    %82 = vector.load %arg8[%c0_22, %c0_23] : memref<1x32xf32, #tpu.memory_space<vmem>>, vector<1x32xf32>
    %83 = vector.broadcast %82 : vector<1x32xf32> to vector<8x32xf32>
    %84 = arith.addf %81, %83 : vector<8x32xf32>
    %85 = arith.addf %5, %84 : vector<8x32xf32>
    %c0_24 = arith.constant 0 : index
    %c0_25 = arith.constant 0 : index
    %86 = vector.load %arg9[%c0_24, %c0_25] : memref<1x32xf32, #tpu.memory_space<vmem>>, vector<1x32xf32>
    %c0_26 = arith.constant 0 : index
    %c0_27 = arith.constant 0 : index
    %87 = vector.load %arg10[%c0_26, %c0_27] : memref<1x32xf32, #tpu.memory_space<vmem>>, vector<1x32xf32>
    %cst_28 = arith.constant dense<0.000000e+00> : vector<8xf32>
    %88 = vector.multi_reduction <add>, %85, %cst_28 [1] : vector<8x32xf32> to vector<8xf32>
    %89 = vector.shape_cast %88 : vector<8xf32> to vector<8x1xf32>
    %cst_29 = arith.constant 3.200000e+01 : f32
    %90 = vector.broadcast %cst_29 : f32 to vector<8x1xf32>
    %91 = arith.divf %89, %90 : vector<8x1xf32>
    %92 = vector.broadcast %91 : vector<8x1xf32> to vector<8x32xf32>
    %93 = arith.subf %85, %92 : vector<8x32xf32>
    %94 = arith.mulf %93, %93 : vector<8x32xf32>
    %cst_30 = arith.constant dense<0.000000e+00> : vector<8xf32>
    %95 = vector.multi_reduction <add>, %94, %cst_30 [1] : vector<8x32xf32> to vector<8xf32>
    %96 = vector.shape_cast %95 : vector<8xf32> to vector<8x1xf32>
    %cst_31 = arith.constant 3.200000e+01 : f32
    %97 = vector.broadcast %cst_31 : f32 to vector<8x1xf32>
    %98 = arith.divf %96, %97 : vector<8x1xf32>
    %99 = vector.broadcast %91 : vector<8x1xf32> to vector<8x32xf32>
    %100 = arith.subf %85, %99 : vector<8x32xf32>
    %cst_32 = arith.constant 9.99999974E-6 : f32
    %101 = vector.broadcast %cst_32 : f32 to vector<8x1xf32>
    %102 = arith.addf %98, %101 : vector<8x1xf32>
    %103 = math.rsqrt %102 : vector<8x1xf32>
    %104 = vector.broadcast %103 : vector<8x1xf32> to vector<8x32xf32>
    %105 = arith.mulf %100, %104 : vector<8x32xf32>
    %106 = vector.broadcast %86 : vector<1x32xf32> to vector<8x32xf32>
    %107 = arith.mulf %105, %106 : vector<8x32xf32>
    %108 = vector.broadcast %87 : vector<1x32xf32> to vector<8x32xf32>
    %109 = arith.addf %107, %108 : vector<8x32xf32>
    %110 = arith.truncf %109 : vector<8x32xf32> to vector<8x32xbf16>
    %c0_33 = arith.constant 0 : index
    %c0_34 = arith.constant 0 : index
    %111 = vector.load %arg11[%c0_33, %c0_34] : memref<32x64xbf16, #tpu.memory_space<vmem>>, vector<32x64xbf16>
    %cst_35 = arith.constant dense<0.000000e+00> : vector<8x64xf32>
    %112 = tpu.matmul %110, %111, %cst_35 {dimension_numbers = #tpu.dot_dimension_numbers<[1], [0], [0], [1], [0, 0, 1, 1], [], []>} : vector<8x32xbf16>, vector<32x64xbf16>, vector<8x64xf32> -> vector<8x64xf32>
    %c0_36 = arith.constant 0 : index
    %c0_37 = arith.constant 0 : index
    %113 = vector.load %arg12[%c0_36, %c0_37] : memref<1x64xf32, #tpu.memory_space<vmem>>, vector<1x64xf32>
    %114 = vector.broadcast %113 : vector<1x64xf32> to vector<8x64xf32>
    %115 = arith.addf %112, %114 : vector<8x64xf32>
    %cst_38 = arith.constant 0.000000e+00 : f32
    %116 = vector.broadcast %cst_38 : f32 to vector<8x64xf32>
    %117 = arith.maximumf %115, %116 : vector<8x64xf32>
    %118 = arith.truncf %117 : vector<8x64xf32> to vector<8x64xbf16>
    %c0_39 = arith.constant 0 : index
    %c0_40 = arith.constant 0 : index
    %119 = vector.load %arg13[%c0_39, %c0_40] : memref<64x32xbf16, #tpu.memory_space<vmem>>, vector<64x32xbf16>
    %cst_41 = arith.constant dense<0.000000e+00> : vector<8x32xf32>
    %120 = tpu.matmul %118, %119, %cst_41 {dimension_numbers = #tpu.dot_dimension_numbers<[1], [0], [0], [1], [0, 0, 1, 1], [], []>} : vector<8x64xbf16>, vector<64x32xbf16>, vector<8x32xf32> -> vector<8x32xf32>
    %c0_42 = arith.constant 0 : index
    %c0_43 = arith.constant 0 : index
    %121 = vector.load %arg14[%c0_42, %c0_43] : memref<1x32xf32, #tpu.memory_space<vmem>>, vector<1x32xf32>
    %122 = vector.broadcast %121 : vector<1x32xf32> to vector<8x32xf32>
    %123 = arith.addf %120, %122 : vector<8x32xf32>
    %124 = arith.addf %109, %123 : vector<8x32xf32>
    %c0_44 = arith.constant 0 : index
    %c0_45 = arith.constant 0 : index
    %125 = vector.load %arg15[%c0_44, %c0_45] : memref<1x32xf32, #tpu.memory_space<vmem>>, vector<1x32xf32>
    %c0_46 = arith.constant 0 : index
    %c0_47 = arith.constant 0 : index
    %126 = vector.load %arg16[%c0_46, %c0_47] : memref<1x32xf32, #tpu.memory_space<vmem>>, vector<1x32xf32>
    %cst_48 = arith.constant dense<0.000000e+00> : vector<8xf32>
    %127 = vector.multi_reduction <add>, %124, %cst_48 [1] : vector<8x32xf32> to vector<8xf32>
    %128 = vector.shape_cast %127 : vector<8xf32> to vector<8x1xf32>
    %cst_49 = arith.constant 3.200000e+01 : f32
    %129 = vector.broadcast %cst_49 : f32 to vector<8x1xf32>
    %130 = arith.divf %128, %129 : vector<8x1xf32>
    %131 = vector.broadcast %130 : vector<8x1xf32> to vector<8x32xf32>
    %132 = arith.subf %124, %131 : vector<8x32xf32>
    %133 = arith.mulf %132, %132 : vector<8x32xf32>
    %cst_50 = arith.constant dense<0.000000e+00> : vector<8xf32>
    %134 = vector.multi_reduction <add>, %133, %cst_50 [1] : vector<8x32xf32> to vector<8xf32>
    %135 = vector.shape_cast %134 : vector<8xf32> to vector<8x1xf32>
    %cst_51 = arith.constant 3.200000e+01 : f32
    %136 = vector.broadcast %cst_51 : f32 to vector<8x1xf32>
    %137 = arith.divf %135, %136 : vector<8x1xf32>
    %138 = vector.broadcast %130 : vector<8x1xf32> to vector<8x32xf32>
    %139 = arith.subf %124, %138 : vector<8x32xf32>
    %cst_52 = arith.constant 9.99999974E-6 : f32
    %140 = vector.broadcast %cst_52 : f32 to vector<8x1xf32>
    %141 = arith.addf %137, %140 : vector<8x1xf32>
    %142 = math.rsqrt %141 : vector<8x1xf32>
    %143 = vector.broadcast %142 : vector<8x1xf32> to vector<8x32xf32>
    %144 = arith.mulf %139, %143 : vector<8x32xf32>
    %145 = vector.broadcast %125 : vector<1x32xf32> to vector<8x32xf32>
    %146 = arith.mulf %144, %145 : vector<8x32xf32>
    %147 = vector.broadcast %126 : vector<1x32xf32> to vector<8x32xf32>
    %148 = arith.addf %146, %147 : vector<8x32xf32>
    %c0_53 = arith.constant 0 : index
    %c0_54 = arith.constant 0 : index
    %c0_55 = arith.constant 0 : index
    %149 = vector.load %arg17[%c0_53, %c0_54, %c0_55] : memref<1x8x32xf32, #tpu.memory_space<vmem>>, vector<1x8x32xf32>
    %150 = vector.shape_cast %149 : vector<1x8x32xf32> to vector<8x32xf32>
    %151 = vector.shape_cast %148 : vector<8x32xf32> to vector<1x8x32xf32>
    tpu.vector_store %arg17[%c0_53, %c0_54, %c0_55], %151 {strides = array<i32>} : memref<1x8x32xf32, #tpu.memory_space<vmem>>, vector<1x8x32xf32>,
    return
  }
  func.func @transform_0(%arg0: i32, %arg1: i32) -> (i32, i32, i32) {
    %c0_i32 = arith.constant 0 : i32
    %c0_i32_0 = arith.constant 0 : i32
    %c0_i32_1 = arith.constant 0 : i32
    return %arg0, %c0_i32, %c0_i32_0 : i32, i32, i32
  }
  func.func @transform_1(%arg0: i32, %arg1: i32) -> (i32, i32) {
    %c0_i32 = arith.constant 0 : i32
    %c0_i32_0 = arith.constant 0 : i32
    %c0_i32_1 = arith.constant 0 : i32
    return %c0_i32, %c0_i32_0 : i32, i32
  }
  func.func @transform_2(%arg0: i32, %arg1: i32) -> (i32, i32, i32) {
    %c0_i32 = arith.constant 0 : i32
    %c0_i32_0 = arith.constant 0 : i32
    %c0_i32_1 = arith.constant 0 : i32
    return %arg0, %c0_i32, %c0_i32_0 : i32, i32, i32
  }
  func.func @transform_3(%arg0: i32, %arg1: i32) -> (i32, i32) {
    %c0_i32 = arith.constant 0 : i32
    %c0_i32_0 = arith.constant 0 : i32
    %c0_i32_1 = arith.constant 0 : i32
    return %c0_i32, %c0_i32_0 : i32, i32
  }
  func.func @transform_4(%arg0: i32, %arg1: i32) -> (i32, i32) {
    %c0_i32 = arith.constant 0 : i32
    %c0_i32_0 = arith.constant 0 : i32
    %c0_i32_1 = arith.constant 0 : i32
    return %c0_i32, %c0_i32_0 : i32, i32
  }
  func.func @transform_5(%arg0: i32, %arg1: i32) -> (i32, i32) {
    %c0_i32 = arith.constant 0 : i32
    %c0_i32_0 = arith.constant 0 : i32
    %c0_i32_1 = arith.constant 0 : i32
    return %c0_i32, %c0_i32_0 : i32, i32
  }
  func.func @transform_6(%arg0: i32, %arg1: i32) -> (i32, i32) {
    %c0_i32 = arith.constant 0 : i32
    %c0_i32_0 = arith.constant 0 : i32
    %c0_i32_1 = arith.constant 0 : i32
    return %c0_i32, %c0_i32_0 : i32, i32
  }
  func.func @transform_7(%arg0: i32, %arg1: i32) -> (i32, i32) {
    %c0_i32 = arith.constant 0 : i32
    %c0_i32_0 = arith.constant 0 : i32
    %c0_i32_1 = arith.constant 0 : i32
    return %c0_i32, %c0_i32_0 : i32, i32
  }
  func.func @transform_8(%arg0: i32, %arg1: i32) -> (i32, i32) {
    %c0_i32 = arith.constant 0 : i32
    %c0_i32_0 = arith.constant 0 : i32
    %c0_i32_1 = arith.constant 0 : i32
    return %c0_i32, %c0_i32_0 : i32, i32
  }
  func.func @transform_9(%arg0: i32, %arg1: i32) -> (i32, i32) {
    %c0_i32 = arith.constant 0 : i32
    %c0_i32_0 = arith.constant 0 : i32
    %c0_i32_1 = arith.constant 0 : i32
    return %c0_i32, %c0_i32_0 : i32, i32
  }
  func.func @transform_10(%arg0: i32, %arg1: i32) -> (i32, i32) {
    %c0_i32 = arith.constant 0 : i32
    %c0_i32_0 = arith.constant 0 : i32
    %c0_i32_1 = arith.constant 0 : i32
    return %c0_i32, %c0_i32_0 : i32, i32
  }
  func.func @transform_11(%arg0: i32, %arg1: i32) -> (i32, i32) {
    %c0_i32 = arith.constant 0 : i32
    %c0_i32_0 = arith.constant 0 : i32
    %c0_i32_1 = arith.constant 0 : i32
    return %c0_i32, %c0_i32_0 : i32, i32
  }
  func.func @transform_12(%arg0: i32, %arg1: i32) -> (i32, i32) {
    %c0_i32 = arith.constant 0 : i32
    %c0_i32_0 = arith.constant 0 : i32
    %c0_i32_1 = arith.constant 0 : i32
    return %c0_i32, %c0_i32_0 : i32, i32
  }
  func.func @transform_13(%arg0: i32, %arg1: i32) -> (i32, i32) {
    %c0_i32 = arith.constant 0 : i32
    %c0_i32_0 = arith.constant 0 : i32
    %c0_i32_1 = arith.constant 0 : i32
    return %c0_i32, %c0_i32_0 : i32, i32
  }
  func.func @transform_14(%arg0: i32, %arg1: i32) -> (i32, i32) {
    %c0_i32 = arith.constant 0 : i32
    %c0_i32_0 = arith.constant 0 : i32
    %c0_i32_1 = arith.constant 0 : i32
    return %c0_i32, %c0_i32_0 : i32, i32
  }
  func.func @transform_15(%arg0: i32, %arg1: i32) -> (i32, i32, i32) {
    %c0_i32 = arith.constant 0 : i32
    %c0_i32_0 = arith.constant 0 : i32
    return %arg0, %arg1, %c0_i32 : i32, i32, i32
  }
}

</mosaic_0001>

<llo_original>
// kernel: tpu_custom_call.1
$region0: #{tpu_custom_call.1}
  #allocation0 [shape = 'u32[]', space=smem, size = 0x4, offset = 0x4, fixed_abs, tag = 'smem constant byte address 0x4 - core index']
  #allocation1 [shape = 'u32[144,128]{1,0:T(1,128)}', space=vmem, size = 0x12000, scoped, tag = 'internal scratch']
  %s0 = inlined_call_operand.vmem [shape: f32[2,8,32], index: 0, kind: input, shape index: {}]
  %s1 = inlined_call_operand.hbm [shape: f32[8,32], index: 1, kind: input, shape index: {}]
  %s2 = inlined_call_operand.vmem [shape: s32[2,1,8], index: 2, kind: input, shape index: {}]
  %s3 = inlined_call_operand.vmem [shape: bf16[32,96], index: 3, kind: input, shape index: {}]
  %s4 = inlined_call_operand.hbm [shape: f32[1,96], index: 4, kind: input, shape index: {}]
  %s5 = inlined_call_operand.vmem [shape: bf16[32,32], index: 5, kind: input, shape index: {}]
  %s6 = inlined_call_operand.hbm [shape: f32[1,32], index: 6, kind: input, shape index: {}]
  %s7 = inlined_call_operand.hbm [shape: f32[1,32], index: 7, kind: input, shape index: {}]
  %s8 = inlined_call_operand.hbm [shape: f32[1,32], index: 8, kind: input, shape index: {}]
  %s9 = inlined_call_operand.vmem [shape: bf16[32,64], index: 9, kind: input, shape index: {}]
  %s10 = inlined_call_operand.vmem [shape: f32[1,64], index: 10, kind: input, shape index: {}]
  %s11 = inlined_call_operand.vmem [shape: bf16[64,32], index: 11, kind: input, shape index: {}]
  %s12 = inlined_call_operand.vmem [shape: f32[1,32], index: 12, kind: input, shape index: {}]
  %s13 = inlined_call_operand.vmem [shape: f32[1,32], index: 13, kind: input, shape index: {}]
  %s14 = inlined_call_operand.vmem [shape: f32[1,32], index: 14, kind: input, shape index: {}]
  %s15 = inlined_call_operand.hbm [shape: f32[2,8,32], index: 15, kind: output, shape index: {}]
  %s16 = sld [smem:[#allocation0]]
  $region113: #{tpu_custom_call.1} parent=0
    _
  %s18 = ssub.s32 1, %s16
  %s19 = scalar_select 0, %s18, %s16
  $region1: #{tpu_custom_call.1} parent=0
    #allocation2 [shape = 'u8[4096]{0}', space=vmem, size = 0x1000, scoped, tag = 'input window, operand 1, single buffered']
    #allocation3 [shape = 's32[2]{0}', space=sflag, size = 0x8, scoped, tag = 'scoped memory for tpu_custom_call.1']
    #allocation4 [shape = 's32[2]{0}', space=sflag, size = 0x8, scoped, tag = 'scoped memory for tpu_custom_call.1']
    #allocation5 [shape = 'u8[512]{0}', space=vmem, size = 0x400, scoped, tag = 'input window, operand 4, single buffered']
    #allocation6 [shape = 's32[1]{0}', space=sflag, size = 0x4, scoped, tag = 'scoped memory for tpu_custom_call.1']
    #allocation7 [shape = 'u8[512]{0}', space=vmem, size = 0x400, scoped, tag = 'input window, operand 6, single buffered']
    #allocation8 [shape = 'u8[512]{0}', space=vmem, size = 0x400, scoped, tag = 'input window, operand 7, single buffered']
    #allocation9 [shape = 's32[1]{0}', space=sflag, size = 0x4, scoped, tag = 'scoped memory for tpu_custom_call.1']
    #allocation10 [shape = 'u8[512]{0}', space=vmem, size = 0x400, scoped, tag = 'input window, operand 8, single buffered']
    #allocation11 [shape = 'u8[8192]{0}', space=vmem, size = 0x2000, scoped, tag = 'output window, operand 0']
    %20 = vsyncpa [#allocation3], 0
    %21 = vsyncpa [#allocation6], 0
    %22 = vsyncpa [#allocation9], 0
    %23 = vsyncpa [#allocation4], 0
    %s24 = scalar_lea.sflag [#allocation4], 1
    %25 = vsyncpa %s24, 0
    loop: start=0, step=1, limit=4
    $region2: #{tpu_custom_call.1} parent=1 // loop_pre_header
      _
    $region3: #{tpu_custom_call.1} parent=1 // loop_header
      %s27 = sphi 0, %s31
      %p28 = scmp.ge.s32.totalorder %s27, 4
      %s34 = sphi 0, %s46
      %s35 = sphi 0, %s42
      %s36 = sphi 0, %s34
      %s37 = sphi 0, %s35
      %s38 = sphi 0, %s36
      %s39 = sphi 0, %s37
      %s49 = sphi 0, %s51
      %s52 = sphi 0, %s49
      %s53 = sphi 0, %s52
      %s69 = sphi 0, %s53
      %s73 = sphi 0, %s73
      %s75 = sphi 0, %s73
      %s76 = sphi 0, %s75
      %s90 = sphi 0, %s76
      %s96 = sphi 0, %s98
      %s99 = sphi 0, %s96
      %s100 = sphi 0, %s99
      %s116 = sphi 0, %s100
      %s120 = sphi 0, %s120
      %s122 = sphi 0, %s120
      %s123 = sphi 0, %s122
      %s137 = sphi 0, %s123
      %s141 = sphi 0, %s141
      %s143 = sphi 0, %s141
      %s144 = sphi 0, %s143
      %s158 = sphi 0, %s144
      %s162 = sphi 0, %s162
      %s164 = sphi 0, %s162
      %s165 = sphi 0, %s164
      %s179 = sphi 0, %s165
      %s183 = sphi 0, %s183
      %s185 = sphi 0, %s183
      %s186 = sphi 0, %s185
      %s200 = sphi 0, %s186
      %s204 = sphi 0, %s204
      %s206 = sphi 0, %s204
      %s207 = sphi 0, %s206
      %s221 = sphi 0, %s207
      %s225 = sphi 0, %s225
      %s227 = sphi 0, %s225
      %s228 = sphi 0, %s227
      %s242 = sphi 0, %s228
      %s246 = sphi 0, %s246
      %s248 = sphi 0, %s246
      %s249 = sphi 0, %s248
      %s263 = sphi 0, %s249
      %s267 = sphi 0, %s267
      %s269 = sphi 0, %s267
      %s270 = sphi 0, %s269
      %s284 = sphi 0, %s270
      %s288 = sphi 0, %s288
      %s290 = sphi 0, %s288
      %s291 = sphi 0, %s290
      %s305 = sphi 0, %s291
      %s309 = sphi 0, %s309
      %s311 = sphi 0, %s309
      %s312 = sphi 0, %s311
      %s326 = sphi 0, %s312
      %s330 = sphi 0, %s330
      %s332 = sphi 0, %s330
      %s333 = sphi 0, %s332
      %s347 = sphi 0, %s333
      %s351 = sphi 0, %s351
      %s353 = sphi 0, %s351
      %s354 = sphi 0, %s353
      %s368 = sphi 0, %s354
      %s376 = sphi 0, %s378
      %s379 = sphi 0, %s376
      %s380 = sphi 0, %s379
      %s396 = sphi 0, %s380
    $region4: #{tpu_custom_call.1} parent=1 // loop_header_branch
      %30 = sbr.rel (%p28) target = $region8
    $region5: #{tpu_custom_call.1} parent=1 // loop_body
      %s32 = ssub.s32 %s27, 1
      %s33 = ssub.s32 %s27, 2
      %s40 = sadd.s32 1, %s35
      %p41 = scmp.ge.s32.totalorder %s40, 1
      %s42 = scalar_select %p41, 0, %s40
      %s43 = sadd.s32 1, %s34
      %s44 = scalar_select %p41, %s43, %s34
      %p45 = scmp.ge.s32.totalorder %s44, 2
      %s46 = scalar_select %p45, 0, %s44
      %s47 = ssub.s32 %s34, %s46
      %p48 = scmp.eq.s32.totalorder %s47, 0
      %s50 = sadd.s32 %s49, 1
      %s51 = scalar_select %p48, %s49, %s50
      %p54 = pneg %p48
      %p55 = scmp.eq.s32.totalorder %s27, 1
      %p56 = por %p54, %p55
      %p57 = scmp.ne.s32.totalorder %s49, %s52
      %p58 = scmp.eq.s32.totalorder %s27, 0
      %p59 = por %p57, %p58
      %p60 = scmp.ne.s32.totalorder %s49, %s52
      %p61 = scmp.eq.s32.totalorder %s32, 1
      %p62 = por %p60, %p61
      %p63 = scmp.ne.s32.totalorder %s52, %s53
      %p64 = scmp.eq.s32.totalorder %s32, 0
      %p65 = por %p63, %p64
      %p66 = scmp.ne.s32.totalorder %s52, %s53
      %p67 = scmp.eq.s32.totalorder %s33, 1
      %p68 = por %p66, %p67
      %p70 = scmp.ne.s32.totalorder %s53, %s69
      %p71 = scmp.eq.s32.totalorder %s33, 0
      %p72 = por %p70, %p71
      %s74 = sadd.s32 %s73, 1
      %p77 = scmp.eq.s32.totalorder %s27, 1
      %p78 = scmp.ne.s32.totalorder %s73, %s75
      %p79 = scmp.eq.s32.totalorder %s27, 0
      %p80 = por %p78, %p79
      %p81 = scmp.ne.s32.totalorder %s73, %s75
      %p82 = scmp.eq.s32.totalorder %s32, 1
      %p83 = por %p81, %p82
      %p84 = scmp.ne.s32.totalorder %s75, %s76
      %p85 = scmp.eq.s32.totalorder %s32, 0
      %p86 = por %p84, %p85
      %p87 = scmp.ne.s32.totalorder %s75, %s76
      %p88 = scmp.eq.s32.totalorder %s33, 1
      %p89 = por %p87, %p88
      %p91 = scmp.ne.s32.totalorder %s76, %s90
      %p92 = scmp.eq.s32.totalorder %s33, 0
      %p93 = por %p91, %p92
      %s94 = ssub.s32 %s34, %s46
      %p95 = scmp.eq.s32.totalorder %s94, 0
      %s97 = sadd.s32 %s96, 1
      %s98 = scalar_select %p95, %s96, %s97
      %p101 = pneg %p95
      %p102 = scmp.eq.s32.totalorder %s27, 1
      %p103 = por %p101, %p102
      %p104 = scmp.ne.s32.totalorder %s96, %s99
      %p105 = scmp.eq.s32.totalorder %s27, 0
      %p106 = por %p104, %p105
      %p107 = scmp.ne.s32.totalorder %s96, %s99
      %p108 = scmp.eq.s32.totalorder %s32, 1
      %p109 = por %p107, %p108
      %p110 = scmp.ne.s32.totalorder %s99, %s100
      %p111 = scmp.eq.s32.totalorder %s32, 0
      %p112 = por %p110, %p111
      %p113 = scmp.ne.s32.totalorder %s99, %s100
      %p114 = scmp.eq.s32.totalorder %s33, 1
      %p115 = por %p113, %p114
      %p117 = scmp.ne.s32.totalorder %s100, %s116
      %p118 = scmp.eq.s32.totalorder %s33, 0
      %p119 = por %p117, %p118
      %s121 = sadd.s32 %s120, 1
      %p124 = scmp.eq.s32.totalorder %s27, 1
      %p125 = scmp.ne.s32.totalorder %s120, %s122
      %p126 = scmp.eq.s32.totalorder %s27, 0
      %p127 = por %p125, %p126
      %p128 = scmp.ne.s32.totalorder %s120, %s122
      %p129 = scmp.eq.s32.totalorder %s32, 1
      %p130 = por %p128, %p129
      %p131 = scmp.ne.s32.totalorder %s122, %s123
      %p132 = scmp.eq.s32.totalorder %s32, 0
      %p133 = por %p131, %p132
      %p134 = scmp.ne.s32.totalorder %s122, %s123
      %p135 = scmp.eq.s32.totalorder %s33, 1
      %p136 = por %p134, %p135
      %p138 = scmp.ne.s32.totalorder %s123, %s137
      %p139 = scmp.eq.s32.totalorder %s33, 0
      %p140 = por %p138, %p139
      %s142 = sadd.s32 %s141, 1
      %p145 = scmp.eq.s32.totalorder %s27, 1
      %p146 = scmp.ne.s32.totalorder %s141, %s143
      %p147 = scmp.eq.s32.totalorder %s27, 0
      %p148 = por %p146, %p147
      %p149 = scmp.ne.s32.totalorder %s141, %s143
      %p150 = scmp.eq.s32.totalorder %s32, 1
      %p151 = por %p149, %p150
      %p152 = scmp.ne.s32.totalorder %s143, %s144
      %p153 = scmp.eq.s32.totalorder %s32, 0
      %p154 = por %p152, %p153
      %p155 = scmp.ne.s32.totalorder %s143, %s144
      %p156 = scmp.eq.s32.totalorder %s33, 1
      %p157 = por %p155, %p156
      %p159 = scmp.ne.s32.totalorder %s144, %s158
      %p160 = scmp.eq.s32.totalorder %s33, 0
      %p161 = por %p159, %p160
      %s163 = sadd.s32 %s162, 1
      %p166 = scmp.eq.s32.totalorder %s27, 1
      %p167 = scmp.ne.s32.totalorder %s162, %s164
      %p168 = scmp.eq.s32.totalorder %s27, 0
      %p169 = por %p167, %p168
      %p170 = scmp.ne.s32.totalorder %s162, %s164
      %p171 = scmp.eq.s32.totalorder %s32, 1
      %p172 = por %p170, %p171
      %p173 = scmp.ne.s32.totalorder %s164, %s165
      %p174 = scmp.eq.s32.totalorder %s32, 0
      %p175 = por %p173, %p174
      %p176 = scmp.ne.s32.totalorder %s164, %s165
      %p177 = scmp.eq.s32.totalorder %s33, 1
      %p178 = por %p176, %p177
      %p180 = scmp.ne.s32.totalorder %s165, %s179
      %p181 = scmp.eq.s32.totalorder %s33, 0
      %p182 = por %p180, %p181
      %s184 = sadd.s32 %s183, 1
      %p187 = scmp.eq.s32.totalorder %s27, 1
      %p188 = scmp.ne.s32.totalorder %s183, %s185
      %p189 = scmp.eq.s32.totalorder %s27, 0
      %p190 = por %p188, %p189
      %p191 = scmp.ne.s32.totalorder %s183, %s185
      %p192 = scmp.eq.s32.totalorder %s32, 1
      %p193 = por %p191, %p192
      %p194 = scmp.ne.s32.totalorder %s185, %s186
      %p195 = scmp.eq.s32.totalorder %s32, 0
      %p196 = por %p194, %p195
      %p197 = scmp.ne.s32.totalorder %s185, %s186
      %p198 = scmp.eq.s32.totalorder %s33, 1
      %p199 = por %p197, %p198
      %p201 = scmp.ne.s32.totalorder %s186, %s200
      %p202 = scmp.eq.s32.totalorder %s33, 0
      %p203 = por %p201, %p202
      %s205 = sadd.s32 %s204, 1
      %p208 = scmp.eq.s32.totalorder %s27, 1
      %p209 = scmp.ne.s32.totalorder %s204, %s206
      %p210 = scmp.eq.s32.totalorder %s27, 0
      %p211 = por %p209, %p210
      %p212 = scmp.ne.s32.totalorder %s204, %s206
      %p213 = scmp.eq.s32.totalorder %s32, 1
      %p214 = por %p212, %p213
      %p215 = scmp.ne.s32.totalorder %s206, %s207
      %p216 = scmp.eq.s32.totalorder %s32, 0
      %p217 = por %p215, %p216
      %p218 = scmp.ne.s32.totalorder %s206, %s207
      %p219 = scmp.eq.s32.totalorder %s33, 1
      %p220 = por %p218, %p219
      %p222 = scmp.ne.s32.totalorder %s207, %s221
      %p223 = scmp.eq.s32.totalorder %s33, 0
      %p224 = por %p222, %p223
      %s226 = sadd.s32 %s225, 1
      %p229 = scmp.eq.s32.totalorder %s27, 1
      %p230 = scmp.ne.s32.totalorder %s225, %s227
      %p231 = scmp.eq.s32.totalorder %s27, 0
      %p232 = por %p230, %p231
      %p233 = scmp.ne.s32.totalorder %s225, %s227
      %p234 = scmp.eq.s32.totalorder %s32, 1
      %p235 = por %p233, %p234
      %p236 = scmp.ne.s32.totalorder %s227, %s228
      %p237 = scmp.eq.s32.totalorder %s32, 0
      %p238 = por %p236, %p237
      %p239 = scmp.ne.s32.totalorder %s227, %s228
      %p240 = scmp.eq.s32.totalorder %s33, 1
      %p241 = por %p239, %p240
      %p243 = scmp.ne.s32.totalorder %s228, %s242
      %p244 = scmp.eq.s32.totalorder %s33, 0
      %p245 = por %p243, %p244
      %s247 = sadd.s32 %s246, 1
      %p250 = scmp.eq.s32.totalorder %s27, 1
      %p251 = scmp.ne.s32.totalorder %s246, %s248
      %p252 = scmp.eq.s32.totalorder %s27, 0
      %p253 = por %p251, %p252
      %p254 = scmp.ne.s32.totalorder %s246, %s248
      %p255 = scmp.eq.s32.totalorder %s32, 1
      %p256 = por %p254, %p255
      %p257 = scmp.ne.s32.totalorder %s248, %s249
      %p258 = scmp.eq.s32.totalorder %s32, 0
      %p259 = por %p257, %p258
      %p260 = scmp.ne.s32.totalorder %s248, %s249
      %p261 = scmp.eq.s32.totalorder %s33, 1
      %p262 = por %p260, %p261
      %p264 = scmp.ne.s32.totalorder %s249, %s263
      %p265 = scmp.eq.s32.totalorder %s33, 0
      %p266 = por %p264, %p265
      %s268 = sadd.s32 %s267, 1
      %p271 = scmp.eq.s32.totalorder %s27, 1
      %p272 = scmp.ne.s32.totalorder %s267, %s269
      %p273 = scmp.eq.s32.totalorder %s27, 0
      %p274 = por %p272, %p273
      %p275 = scmp.ne.s32.totalorder %s267, %s269
      %p276 = scmp.eq.s32.totalorder %s32, 1
      %p277 = por %p275, %p276
      %p278 = scmp.ne.s32.totalorder %s269, %s270
      %p279 = scmp.eq.s32.totalorder %s32, 0
      %p280 = por %p278, %p279
      %p281 = scmp.ne.s32.totalorder %s269, %s270
      %p282 = scmp.eq.s32.totalorder %s33, 1
      %p283 = por %p281, %p282
      %p285 = scmp.ne.s32.totalorder %s270, %s284
      %p286 = scmp.eq.s32.totalorder %s33, 0
      %p287 = por %p285, %p286
      %s289 = sadd.s32 %s288, 1
      %p292 = scmp.eq.s32.totalorder %s27, 1
      %p293 = scmp.ne.s32.totalorder %s288, %s290
      %p294 = scmp.eq.s32.totalorder %s27, 0
      %p295 = por %p293, %p294
      %p296 = scmp.ne.s32.totalorder %s288, %s290
      %p297 = scmp.eq.s32.totalorder %s32, 1
      %p298 = por %p296, %p297
      %p299 = scmp.ne.s32.totalorder %s290, %s291
      %p300 = scmp.eq.s32.totalorder %s32, 0
      %p301 = por %p299, %p300
      %p302 = scmp.ne.s32.totalorder %s290, %s291
      %p303 = scmp.eq.s32.totalorder %s33, 1
      %p304 = por %p302, %p303
      %p306 = scmp.ne.s32.totalorder %s291, %s305
      %p307 = scmp.eq.s32.totalorder %s33, 0
      %p308 = por %p306, %p307
      %s310 = sadd.s32 %s309, 1
      %p313 = scmp.eq.s32.totalorder %s27, 1
      %p314 = scmp.ne.s32.totalorder %s309, %s311
      %p315 = scmp.eq.s32.totalorder %s27, 0
      %p316 = por %p314, %p315
      %p317 = scmp.ne.s32.totalorder %s309, %s311
      %p318 = scmp.eq.s32.totalorder %s32, 1
      %p319 = por %p317, %p318
      %p320 = scmp.ne.s32.totalorder %s311, %s312
      %p321 = scmp.eq.s32.totalorder %s32, 0
      %p322 = por %p320, %p321
      %p323 = scmp.ne.s32.totalorder %s311, %s312
      %p324 = scmp.eq.s32.totalorder %s33, 1
      %p325 = por %p323, %p324
      %p327 = scmp.ne.s32.totalorder %s312, %s326
      %p328 = scmp.eq.s32.totalorder %s33, 0
      %p329 = por %p327, %p328
      %s331 = sadd.s32 %s330, 1
      %p334 = scmp.eq.s32.totalorder %s27, 1
      %p335 = scmp.ne.s32.totalorder %s330, %s332
      %p336 = scmp.eq.s32.totalorder %s27, 0
      %p337 = por %p335, %p336
      %p338 = scmp.ne.s32.totalorder %s330, %s332
      %p339 = scmp.eq.s32.totalorder %s32, 1
      %p340 = por %p338, %p339
      %p341 = scmp.ne.s32.totalorder %s332, %s333
      %p342 = scmp.eq.s32.totalorder %s32, 0
      %p343 = por %p341, %p342
      %p344 = scmp.ne.s32.totalorder %s332, %s333
      %p345 = scmp.eq.s32.totalorder %s33, 1
      %p346 = por %p344, %p345
      %p348 = scmp.ne.s32.totalorder %s333, %s347
      %p349 = scmp.eq.s32.totalorder %s33, 0
      %p350 = por %p348, %p349
      %s352 = sadd.s32 %s351, 1
      %p355 = scmp.eq.s32.totalorder %s27, 1
      %p356 = scmp.ne.s32.totalorder %s351, %s353
      %p357 = scmp.eq.s32.totalorder %s27, 0
      %p358 = por %p356, %p357
      %p359 = scmp.ne.s32.totalorder %s351, %s353
      %p360 = scmp.eq.s32.totalorder %s32, 1
      %p361 = por %p359, %p360
      %p362 = scmp.ne.s32.totalorder %s353, %s354
      %p363 = scmp.eq.s32.totalorder %s32, 0
      %p364 = por %p362, %p363
      %p365 = scmp.ne.s32.totalorder %s353, %s354
      %p366 = scmp.eq.s32.totalorder %s33, 1
      %p367 = por %p365, %p366
      %p369 = scmp.ne.s32.totalorder %s354, %s368
      %p370 = scmp.eq.s32.totalorder %s33, 0
      %p371 = por %p369, %p370
      %s372 = ssub.s32 %s34, %s46
      %s373 = ssub.s32 %s35, %s42
      %s374 = sor.u32 %s372, %s373
      %p375 = scmp.eq.s32.totalorder %s374, 0
      %s377 = sadd.s32 %s376, 1
      %s378 = scalar_select %p375, %s376, %s377
      %p381 = pneg %p375
      %p382 = scmp.eq.s32.totalorder %s27, 1
      %p383 = por %p381, %p382
      %p384 = scmp.ne.s32.totalorder %s376, %s379
      %p385 = scmp.eq.s32.totalorder %s27, 0
      %p386 = por %p384, %p385
      %p387 = scmp.ne.s32.totalorder %s376, %s379
      %p388 = scmp.eq.s32.totalorder %s32, 1
      %p389 = por %p387, %p388
      %p390 = scmp.ne.s32.totalorder %s379, %s380
      %p391 = scmp.eq.s32.totalorder %s32, 0
      %p392 = por %p390, %p391
      %p393 = scmp.ne.s32.totalorder %s379, %s380
      %p394 = scmp.eq.s32.totalorder %s33, 1
      %p395 = por %p393, %p394
      %p397 = scmp.ne.s32.totalorder %s380, %s396
      %p398 = scmp.eq.s32.totalorder %s33, 0
      %p399 = por %p397, %p398
      %p400 = scmp.le.s32.totalorder 1, %s27
      %p401 = scmp.lt.s32.totalorder %s27, 3
      %p402 = pnand %p400, %p401
      %p403 = pneg %p402
      // Predicated region
      $region9: #{tpu_custom_call.1} parent=5 // pred_check
        _
      $region10: #{tpu_custom_call.1} parent=5 // pred_check_branch
        %405 = sbr.rel (%p402) target = $region12
      $region11: #{tpu_custom_call.1} parent=5 // pred_region
        %s406 = ssub.s32 %s27, 1
        // Predicated region
        $region13: #{tpu_custom_call.1} parent=11 // pred_check
          %p407 = pneg %p86
        $region14: #{tpu_custom_call.1} parent=11 // pred_check_branch
          %409 = sbr.rel (%p407) target = $region16
        $region15: #{tpu_custom_call.1} parent=11 // pred_region
          %s411 = ssub.s32 128, 128
          %412 = vsyncadd [#allocation3], %s411
          %s414 = sshll.u32 [#allocation2], 4
          %s415 = int_to_ptr.vmem [resolvable:$true] %s414
          %417 = dma.hbm_to_vmem [thread:$0]  %s1, 128, %s415, [#allocation3]
        $region16: #{tpu_custom_call.1} parent=11 // pred_fallthru
          _
        // Predicated region
        $region17: #{tpu_custom_call.1} parent=11 // pred_check
          %p418 = pneg %p133
        $region18: #{tpu_custom_call.1} parent=11 // pred_check_branch
          %420 = sbr.rel (%p418) target = $region20
        $region19: #{tpu_custom_call.1} parent=11 // pred_region
          _
        $region20: #{tpu_custom_call.1} parent=11 // pred_fallthru
          _
        // Predicated region
        $region21: #{tpu_custom_call.1} parent=11 // pred_check
          %p421 = pneg %p154
        $region22: #{tpu_custom_call.1} parent=11 // pred_check_branch
          %423 = sbr.rel (%p421) target = $region24
        $region23: #{tpu_custom_call.1} parent=11 // pred_region
          %s425 = ssub.s32 16, 16
          %426 = vsyncadd [#allocation6], %s425
          %s428 = sshll.u32 [#allocation5], 4
          %s429 = int_to_ptr.vmem [resolvable:$true] %s428
          %431 = dma.hbm_to_vmem [thread:$0]  %s4, 16, %s429, [#allocation6]
        $region24: #{tpu_custom_call.1} parent=11 // pred_fallthru
          _
        // Predicated region
        $region25: #{tpu_custom_call.1} parent=11 // pred_check
          %p432 = pneg %p175
        $region26: #{tpu_custom_call.1} parent=11 // pred_check_branch
          %434 = sbr.rel (%p432) target = $region28
        $region27: #{tpu_custom_call.1} parent=11 // pred_region
          _
        $region28: #{tpu_custom_call.1} parent=11 // pred_fallthru
          _
        // Predicated region
        $region29: #{tpu_custom_call.1} parent=11 // pred_check
          %p435 = pneg %p196
        $region30: #{tpu_custom_call.1} parent=11 // pred_check_branch
          %437 = sbr.rel (%p435) target = $region32
        $region31: #{tpu_custom_call.1} parent=11 // pred_region
          %s439 = ssub.s32 16, 16
          %440 = vsyncadd [#allocation6], %s439
          %s442 = sshll.u32 [#allocation7], 4
          %s443 = int_to_ptr.vmem [resolvable:$true] %s442
          %445 = dma.hbm_to_vmem [thread:$0]  %s6, 16, %s443, [#allocation6]
        $region32: #{tpu_custom_call.1} parent=11 // pred_fallthru
          _
        // Predicated region
        $region33: #{tpu_custom_call.1} parent=11 // pred_check
          %p446 = pneg %p217
        $region34: #{tpu_custom_call.1} parent=11 // pred_check_branch
          %448 = sbr.rel (%p446) target = $region36
        $region35: #{tpu_custom_call.1} parent=11 // pred_region
          %s450 = ssub.s32 16, 16
          %451 = vsyncadd [#allocation9], %s450
          %s453 = sshll.u32 [#allocation8], 4
          %s454 = int_to_ptr.vmem [resolvable:$true] %s453
          %456 = dma.hbm_to_vmem [thread:$0]  %s7, 16, %s454, [#allocation9]
        $region36: #{tpu_custom_call.1} parent=11 // pred_fallthru
          _
        // Predicated region
        $region37: #{tpu_custom_call.1} parent=11 // pred_check
          %p457 = pneg %p238
        $region38: #{tpu_custom_call.1} parent=11 // pred_check_branch
          %459 = sbr.rel (%p457) target = $region40
        $region39: #{tpu_custom_call.1} parent=11 // pred_region
          %s461 = ssub.s32 16, 16
          %462 = vsyncadd [#allocation9], %s461
          %s464 = sshll.u32 [#allocation10], 4
          %s465 = int_to_ptr.vmem [resolvable:$true] %s464
          %467 = dma.hbm_to_vmem [thread:$0]  %s8, 16, %s465, [#allocation9]
        $region40: #{tpu_custom_call.1} parent=11 // pred_fallthru
          _
        // Predicated region
        $region41: #{tpu_custom_call.1} parent=11 // pred_check
          %p468 = pneg %p259
        $region42: #{tpu_custom_call.1} parent=11 // pred_check_branch
          %470 = sbr.rel (%p468) target = $region44
        $region43: #{tpu_custom_call.1} parent=11 // pred_region
          _
        $region44: #{tpu_custom_call.1} parent=11 // pred_fallthru
          _
        // Predicated region
        $region45: #{tpu_custom_call.1} parent=11 // pred_check
          %p471 = pneg %p280
        $region46: #{tpu_custom_call.1} parent=11 // pred_check_branch
          %473 = sbr.rel (%p471) target = $region48
        $region47: #{tpu_custom_call.1} parent=11 // pred_region
          _
        $region48: #{tpu_custom_call.1} parent=11 // pred_fallthru
          _
        // Predicated region
        $region49: #{tpu_custom_call.1} parent=11 // pred_check
          %p474 = pneg %p301
        $region50: #{tpu_custom_call.1} parent=11 // pred_check_branch
          %476 = sbr.rel (%p474) target = $region52
        $region51: #{tpu_custom_call.1} parent=11 // pred_region
          _
        $region52: #{tpu_custom_call.1} parent=11 // pred_fallthru
          _
        // Predicated region
        $region53: #{tpu_custom_call.1} parent=11 // pred_check
          %p477 = pneg %p322
        $region54: #{tpu_custom_call.1} parent=11 // pred_check_branch
          %479 = sbr.rel (%p477) target = $region56
        $region55: #{tpu_custom_call.1} parent=11 // pred_region
          _
        $region56: #{tpu_custom_call.1} parent=11 // pred_fallthru
          _
        // Predicated region
        $region57: #{tpu_custom_call.1} parent=11 // pred_check
          %p480 = pneg %p343
        $region58: #{tpu_custom_call.1} parent=11 // pred_check_branch
          %482 = sbr.rel (%p480) target = $region60
        $region59: #{tpu_custom_call.1} parent=11 // pred_region
          _
        $region60: #{tpu_custom_call.1} parent=11 // pred_fallthru
          _
        // Predicated region
        $region61: #{tpu_custom_call.1} parent=11 // pred_check
          %p483 = pneg %p364
        $region62: #{tpu_custom_call.1} parent=11 // pred_check_branch
          %485 = sbr.rel (%p483) target = $region64
        $region63: #{tpu_custom_call.1} parent=11 // pred_region
          _
        $region64: #{tpu_custom_call.1} parent=11 // pred_fallthru
          _
      $region12: #{tpu_custom_call.1} parent=5 // pred_fallthru
        _
      %p486 = scmp.lt.s32.totalorder %s27, 2
      // Predicated region
      $region65: #{tpu_custom_call.1} parent=5 // pred_check
        %p487 = pneg %p486
      $region66: #{tpu_custom_call.1} parent=5 // pred_check_branch
        %489 = sbr.rel (%p487) target = $region68
      $region67: #{tpu_custom_call.1} parent=5 // pred_region
        // Predicated region
        $region69: #{tpu_custom_call.1} parent=67 // pred_check
          %p490 = pneg %p59
        $region70: #{tpu_custom_call.1} parent=67 // pred_check_branch
          %492 = sbr.rel (%p490) target = $region72
        $region71: #{tpu_custom_call.1} parent=67 // pred_region
          %p493 = scmp.lt.s32.totalorder %s34, 1
          %s494 = scalar_select %p493, %s34, 1
          %s495 = smul.addr %s494, 8
          %s496 = scalar_lea.vmem %s0, %s495
        $region72: #{tpu_custom_call.1} parent=67 // pred_fallthru
          _
        // Predicated region
        $region73: #{tpu_custom_call.1} parent=67 // pred_check
          %p497 = pneg %p106
        $region74: #{tpu_custom_call.1} parent=67 // pred_check_branch
          %499 = sbr.rel (%p497) target = $region76
        $region75: #{tpu_custom_call.1} parent=67 // pred_region
          %p500 = scmp.lt.s32.totalorder %s34, 1
          %s501 = scalar_select %p500, %s34, 1
          %s502 = scalar_lea.vmem %s2, %s501
        $region76: #{tpu_custom_call.1} parent=67 // pred_fallthru
          _
      $region68: #{tpu_custom_call.1} parent=5 // pred_fallthru
        _
      %p503 = scmp.le.s32.totalorder 1, %s27
      %p504 = scmp.lt.s32.totalorder %s27, 3
      %p505 = pnand %p503, %p504
      %p506 = pneg %p505
      // Predicated region
      $region77: #{tpu_custom_call.1} parent=5 // pred_check
        _
      $region78: #{tpu_custom_call.1} parent=5 // pred_check_branch
        %508 = sbr.rel (%p505) target = $region80
      $region79: #{tpu_custom_call.1} parent=5 // pred_region
        %s509 = ssub.s32 %s27, 1
        // Predicated region
        $region81: #{tpu_custom_call.1} parent=79 // pred_check
          %p510 = pneg %p86
        $region82: #{tpu_custom_call.1} parent=79 // pred_check_branch
          %512 = sbr.rel (%p510) target = $region84
        $region83: #{tpu_custom_call.1} parent=79 // pred_region
          %513 = dma.done [#allocation3], 128
        $region84: #{tpu_custom_call.1} parent=79 // pred_fallthru
          _
        // Predicated region
        $region85: #{tpu_custom_call.1} parent=79 // pred_check
          %p514 = pneg %p154
        $region86: #{tpu_custom_call.1} parent=79 // pred_check_branch
          %516 = sbr.rel (%p514) target = $region88
        $region87: #{tpu_custom_call.1} parent=79 // pred_region
          %517 = dma.done [#allocation6], 16
        $region88: #{tpu_custom_call.1} parent=79 // pred_fallthru
          _
        // Predicated region
        $region89: #{tpu_custom_call.1} parent=79 // pred_check
          %p518 = pneg %p196
        $region90: #{tpu_custom_call.1} parent=79 // pred_check_branch
          %520 = sbr.rel (%p518) target = $region92
        $region91: #{tpu_custom_call.1} parent=79 // pred_region
          %521 = dma.done [#allocation6], 16
        $region92: #{tpu_custom_call.1} parent=79 // pred_fallthru
          _
        // Predicated region
        $region93: #{tpu_custom_call.1} parent=79 // pred_check
          %p522 = pneg %p217
        $region94: #{tpu_custom_call.1} parent=79 // pred_check_branch
          %524 = sbr.rel (%p522) target = $region96
        $region95: #{tpu_custom_call.1} parent=79 // pred_region
          %525 = dma.done [#allocation9], 16
        $region96: #{tpu_custom_call.1} parent=79 // pred_fallthru
          _
        // Predicated region
        $region97: #{tpu_custom_call.1} parent=79 // pred_check
          %p526 = pneg %p238
        $region98: #{tpu_custom_call.1} parent=79 // pred_check_branch
          %528 = sbr.rel (%p526) target = $region100
        $region99: #{tpu_custom_call.1} parent=79 // pred_region
          %529 = dma.done [#allocation9], 16
        $region100: #{tpu_custom_call.1} parent=79 // pred_fallthru
          _
        %p530 = scmp.lt.s32.totalorder %s36, 1
        %s531 = scalar_select %p530, %s36, 1
        %s532 = smul.addr %s531, 8
        %s533 = scalar_lea.vmem %s0, %s532
        %p534 = pneg %p65
        %p535 = pneg %p62
        %p536 = pneg %p86
        %p537 = pneg %p83
        %p538 = scmp.lt.s32.totalorder %s36, 1
        %s539 = scalar_select %p538, %s36, 1
        %s540 = scalar_lea.vmem %s2, %s539
        %p541 = pneg %p112
        %p542 = pneg %p109
        %p543 = pneg %p133
        %p544 = pneg %p130
        %p545 = pneg %p154
        %p546 = pneg %p151
        %p547 = pneg %p175
        %p548 = pneg %p172
        %p549 = pneg %p196
        %p550 = pneg %p193
        %p551 = pneg %p217
        %p552 = pneg %p214
        %p553 = pneg %p238
        %p554 = pneg %p235
        %p555 = pneg %p259
        %p556 = pneg %p256
        %p557 = pneg %p280
        %p558 = pneg %p277
        %p559 = pneg %p301
        %p560 = pneg %p298
        %p561 = pneg %p322
        %p562 = pneg %p319
        %p563 = pneg %p343
        %p564 = pneg %p340
        %p565 = pneg %p364
        %p566 = pneg %p361
        %p567 = pneg %p392
        %p568 = pneg %p389
        %s569 = sand.u32 %s379, 1
        %s570 = scalar_lea.sflag [#allocation4], %s569
        %s571 = sand.u32 %s379, 1
        %s572 = smul.addr %s571, 8
        %s573 = scalar_lea.vmem [#allocation11], %s572
        %p574 = scmp.lt.s32.totalorder %s36, 1
        %s575 = scalar_select %p574, %s36, 1
        %s576 = smul.addr %s575, 8
        %s577 = scalar_lea.vmem %s0, %s576
        %p578 = scmp.lt.s32.totalorder %s36, 1
        %s579 = scalar_select %p578, %s36, 1
        %s580 = scalar_lea.vmem %s2, %s579
        %v582 = vld [vmem:[%s577] sm:$0xff]
        %v583 = vmul.f32 %v582, 5.656854
        %v584 = vld [vmem:[#allocation2] sm:$0xff]
        %v585 = vadd.f32 %v583, %v584
        %v586 = vld [vmem:[%s580] sm:$0x1]
        %vm587 = vcmp.eq.s32.totalorder %v586, 0
        %v588 = vsel %vm587, -1e+10, 0.0
        %v589 = vpack.c.bf16 %v585, %v585
        %v590 = vld [vmem:[%s3] sm:$0xf]
        %v591 = vld [vmem:[%s3 + $0x4] sm:$0xf]
        %v592 = vld [vmem:[%s3 + $0x8] sm:$0xf]
        %v593 = vld [vmem:[%s3 + $0xc] sm:$0xf]
        %v594 = vld [vmem:[#allocation5] sm:$0x1]
        %v596 = vlaneseq
        %v597 = vshrl.u32 %v596, 7
        %v598 = vsub.s32 0, %v597
        %v599 = vrot.slane %v594, %v598
        %v605 = vunpack.c.l.b16 %v590
        %v606 = vunpack.c.l.b16 %v591
        %v607 = vunpack.c.l.b16 %v592
        %v608 = vunpack.c.l.b16 %v593
        %v609 = vpack.c.b16 %v606, %v605
        %v610 = vpack.c.b16 %v608, %v607
        %vm613 = vcmask 261120
        %v615 = vsel %vm613, %v589, 0
        %617 = vmatprep.subr.bf16.mxu0 0
        %618 = vmatpush1.bf16.msra.mxu0 %v609
        %619 = vmatprep.subr.bf16.mxu0 0
        %620 = vmatpush1.bf16.msra.mxu0 %v610
        %621 = vmatprep.subr.bf16.mxu0 0
        %622 = vmatpush1.bf16.msra.mxu0 0
        %623 = vmatprep.subr.bf16.mxu0 0
        %624 = vmatpush1.bf16.msra.mxu0 0
        %625 = vmatprep.subr.bf16.mxu0 0
        %626 = vmatpush1.bf16.msra.mxu0 0
        %627 = vmatprep.subr.bf16.mxu0 0
        %628 = vmatpush1.bf16.msra.mxu0 0
        %629 = vmatprep.subr.bf16.mxu0 0
        %630 = vmatpush1.bf16.msra.mxu0 0
        %631 = vmatprep.subr.bf16.mxu0 0
        %632 = vmatpush1.bf16.msra.mxu0 0
        %633 = vmatprep.subr.bf16.mxu0 0
        %634 = vmatpush1.bf16.msra.mxu0 0
        %635 = vmatprep.subr.bf16.mxu0 0
        %636 = vmatpush1.bf16.msra.mxu0 0
        %637 = vmatprep.subr.bf16.mxu0 0
        %638 = vmatpush1.bf16.msra.mxu0 0
        %639 = vmatprep.subr.bf16.mxu0 0
        %640 = vmatpush1.bf16.msra.mxu0 0
        %641 = vmatprep.subr.bf16.mxu0 0
        %642 = vmatpush1.bf16.msra.mxu0 0
        %643 = vmatprep.subr.bf16.mxu0 0
        %644 = vmatpush1.bf16.msra.mxu0 0
        %645 = vmatprep.subr.bf16.mxu0 0
        %646 = vmatpush1.bf16.msra.mxu0 0
        %647 = vmatprep.subr.bf16.mxu0 0
        %648 = vmatpush1.bf16.msra.mxu0 0
        %649 = vmatprep.mubr.bf16.mxu0 0
        %650 = vmatmul.mubr.bf16.gmra.mrb[0].mxu0 %v615
        %v651 = vpop.f32.mrb[0].mxu0
        %v652 = vadd.f32 %v599, %v651
        %v653 = vpop.f32.mrb[0].mxu0
        %v654 = vpop.f32.mrb[0].mxu0
        %v655 = vpop.f32.mrb[0].mxu0
        %656 = vdwg.mxu0
        %v657 = vmul.f32 %v652, 0.35355338
        %659 = vrot.lane.b32.xlu0 %v657, 120
        %v660 = vpop.permute.xlu0 %659
        %662 = vrot.lane.b32.xlu0 %v657, 112
        %v663 = vpop.permute.xlu0 %662
        %665 = vrot.lane.b32.xlu0 %v657, 104
        %v666 = vpop.permute.xlu0 %665
        %669 = vrot.lane.b32.xlu0 %v652, 120
        %v670 = vpop.permute.xlu0 %669
        %672 = vrot.lane.b32.xlu0 %v652, 112
        %v673 = vpop.permute.xlu0 %672
        %675 = vrot.lane.b32.xlu0 %v652, 104
        %v676 = vpop.permute.xlu0 %675
        %v678 = vpack.c.bf16 %v657, %v657
        %v679 = vpack.c.bf16 %v660, %v660
        %v680 = vpack.c.bf16 %v663, %v663
        %v681 = vpack.c.bf16 %v666, %v666
        %v682 = vpack.c.bf16 %v652, %v652
        %v683 = vpack.c.bf16 %v670, %v670
        %v684 = vpack.c.bf16 %v673, %v673
        %v685 = vpack.c.bf16 %v676, %v676
        %v687 = vlaneseq
        %v688 = vshrl.u32 %v687, 7
        %v689 = vsub.s32 0, %v688
        %v690 = vrot.slane %v588, %v689
        %693 = vrot.lane.b32.xlu0 %v682, 96
        %v694 = vpop.permute.xlu0 %693
        %vm695 = vcmask 64512
        %v697 = vsel %vm695, %v678, 0
        %v700 = vsel %vm695, %v694, 0
        %702 = vmatprep.subr.bf16.mxu0 0
        %703 = vmatpush1.bf16.xpose.msra.mxu0 %v700
        %704 = vmatprep.subr.bf16.mxu0 0
        %705 = vmatpush1.bf16.xpose.msra.mxu0 0
        %706 = vmatprep.subr.bf16.mxu0 0
        %707 = vmatpush1.bf16.xpose.msra.mxu0 0
        %708 = vmatprep.subr.bf16.mxu0 0
        %709 = vmatpush1.bf16.xpose.msra.mxu0 0
        %710 = vmatprep.subr.bf16.mxu0 0
        %711 = vmatpush1.bf16.xpose.msra.mxu0 0
        %712 = vmatprep.subr.bf16.mxu0 0
        %713 = vmatpush1.bf16.xpose.msra.mxu0 0
        %714 = vmatprep.subr.bf16.mxu0 0
        %715 = vmatpush1.bf16.xpose.msra.mxu0 0
        %716 = vmatprep.subr.bf16.mxu0 0
        %717 = vmatpush1.bf16.xpose.msra.mxu0 0
        %718 = vmatprep.subr.bf16.mxu0 0
        %719 = vmatpush1.bf16.xpose.msra.mxu0 0
        %720 = vmatprep.subr.bf16.mxu0 0
        %721 = vmatpush1.bf16.xpose.msra.mxu0 0
        %722 = vmatprep.subr.bf16.mxu0 0
        %723 = vmatpush1.bf16.xpose.msra.mxu0 0
        %724 = vmatprep.subr.bf16.mxu0 0
        %725 = vmatpush1.bf16.xpose.msra.mxu0 0
        %726 = vmatprep.subr.bf16.mxu0 0
        %727 = vmatpush1.bf16.xpose.msra.mxu0 0
        %728 = vmatprep.subr.bf16.mxu0 0
        %729 = vmatpush1.bf16.xpose.msra.mxu0 0
        %730 = vmatprep.subr.bf16.mxu0 0
        %731 = vmatpush1.bf16.xpose.msra.mxu0 0
        %732 = vmatprep.subr.bf16.mxu0 0
        %733 = vmatpush1.bf16.xpose.msra.mxu0 0
        %734 = vmatprep.mubr.bf16.mxu0 0
        %735 = vmatmul.mubr.bf16.gmra.mrb[0].mxu0 %v697
        %v736 = vpop.f32.mrb[0].mxu0
        %v737 = vadd.f32 %v690, %v736
        %v738 = vpop.f32.mrb[0].mxu0
        %v739 = vpop.f32.mrb[0].mxu0
        %v740 = vpop.f32.mrb[0].mxu0
        %741 = vdwg.mxu0
        %743 = vrot.lane.b32.xlu0 %v683, 96
        %v744 = vpop.permute.xlu0 %743
        %v746 = vsel %vm695, %v679, 0
        %v749 = vsel %vm695, %v744, 0
        %751 = vmatprep.subr.bf16.mxu0 0
        %752 = vmatpush1.bf16.xpose.msra.mxu0 %v749
        %753 = vmatprep.subr.bf16.mxu0 0
        %754 = vmatpush1.bf16.xpose.msra.mxu0 0
        %755 = vmatprep.subr.bf16.mxu0 0
        %756 = vmatpush1.bf16.xpose.msra.mxu0 0
        %757 = vmatprep.subr.bf16.mxu0 0
        %758 = vmatpush1.bf16.xpose.msra.mxu0 0
        %759 = vmatprep.subr.bf16.mxu0 0
        %760 = vmatpush1.bf16.xpose.msra.mxu0 0
        %761 = vmatprep.subr.bf16.mxu0 0
        %762 = vmatpush1.bf16.xpose.msra.mxu0 0
        %763 = vmatprep.subr.bf16.mxu0 0
        %764 = vmatpush1.bf16.xpose.msra.mxu0 0
        %765 = vmatprep.subr.bf16.mxu0 0
        %766 = vmatpush1.bf16.xpose.msra.mxu0 0
        %767 = vmatprep.subr.bf16.mxu0 0
        %768 = vmatpush1.bf16.xpose.msra.mxu0 0
        %769 = vmatprep.subr.bf16.mxu0 0
        %770 = vmatpush1.bf16.xpose.msra.mxu0 0
        %771 = vmatprep.subr.bf16.mxu0 0
        %772 = vmatpush1.bf16.xpose.msra.mxu0 0
        %773 = vmatprep.subr.bf16.mxu0 0
        %774 = vmatpush1.bf16.xpose.msra.mxu0 0
        %775 = vmatprep.subr.bf16.mxu0 0
        %776 = vmatpush1.bf16.xpose.msra.mxu0 0
        %777 = vmatprep.subr.bf16.mxu0 0
        %778 = vmatpush1.bf16.xpose.msra.mxu0 0
        %779 = vmatprep.subr.bf16.mxu0 0
        %780 = vmatpush1.bf16.xpose.msra.mxu0 0
        %781 = vmatprep.subr.bf16.mxu0 0
        %782 = vmatpush1.bf16.xpose.msra.mxu0 0
        %783 = vmatprep.mubr.bf16.mxu0 0
        %784 = vmatmul.mubr.bf16.gmra.mrb[0].mxu0 %v746
        %v785 = vpop.f32.mrb[0].mxu0
        %v786 = vadd.f32 %v690, %v785
        %v787 = vpop.f32.mrb[0].mxu0
        %v788 = vpop.f32.mrb[0].mxu0
        %v789 = vpop.f32.mrb[0].mxu0
        %790 = vdwg.mxu0
        %792 = vrot.lane.b32.xlu0 %v684, 96
        %v793 = vpop.permute.xlu0 %792
        %v795 = vsel %vm695, %v680, 0
        %v798 = vsel %vm695, %v793, 0
        %800 = vmatprep.subr.bf16.mxu0 0
        %801 = vmatpush1.bf16.xpose.msra.mxu0 %v798
        %802 = vmatprep.subr.bf16.mxu0 0
        %803 = vmatpush1.bf16.xpose.msra.mxu0 0
        %804 = vmatprep.subr.bf16.mxu0 0
        %805 = vmatpush1.bf16.xpose.msra.mxu0 0
        %806 = vmatprep.subr.bf16.mxu0 0
        %807 = vmatpush1.bf16.xpose.msra.mxu0 0
        %808 = vmatprep.subr.bf16.mxu0 0
        %809 = vmatpush1.bf16.xpose.msra.mxu0 0
        %810 = vmatprep.subr.bf16.mxu0 0
        %811 = vmatpush1.bf16.xpose.msra.mxu0 0
        %812 = vmatprep.subr.bf16.mxu0 0
        %813 = vmatpush1.bf16.xpose.msra.mxu0 0
        %814 = vmatprep.subr.bf16.mxu0 0
        %815 = vmatpush1.bf16.xpose.msra.mxu0 0
        %816 = vmatprep.subr.bf16.mxu0 0
        %817 = vmatpush1.bf16.xpose.msra.mxu0 0
        %818 = vmatprep.subr.bf16.mxu0 0
        %819 = vmatpush1.bf16.xpose.msra.mxu0 0
        %820 = vmatprep.subr.bf16.mxu0 0
        %821 = vmatpush1.bf16.xpose.msra.mxu0 0
        %822 = vmatprep.subr.bf16.mxu0 0
        %823 = vmatpush1.bf16.xpose.msra.mxu0 0
        %824 = vmatprep.subr.bf16.mxu0 0
        %825 = vmatpush1.bf16.xpose.msra.mxu0 0
        %826 = vmatprep.subr.bf16.mxu0 0
        %827 = vmatpush1.bf16.xpose.msra.mxu0 0
        %828 = vmatprep.subr.bf16.mxu0 0
        %829 = vmatpush1.bf16.xpose.msra.mxu0 0
        %830 = vmatprep.subr.bf16.mxu0 0
        %831 = vmatpush1.bf16.xpose.msra.mxu0 0
        %832 = vmatprep.mubr.bf16.mxu0 0
        %833 = vmatmul.mubr.bf16.gmra.mrb[0].mxu0 %v795
        %v834 = vpop.f32.mrb[0].mxu0
        %v835 = vadd.f32 %v690, %v834
        %v836 = vpop.f32.mrb[0].mxu0
        %v837 = vpop.f32.mrb[0].mxu0
        %v838 = vpop.f32.mrb[0].mxu0
        %839 = vdwg.mxu0
        %841 = vrot.lane.b32.xlu0 %v685, 96
        %v842 = vpop.permute.xlu0 %841
        %v844 = vsel %vm695, %v681, 0
        %v847 = vsel %vm695, %v842, 0
        %849 = vmatprep.subr.bf16.mxu0 0
        %850 = vmatpush1.bf16.xpose.msra.mxu0 %v847
        %851 = vmatprep.subr.bf16.mxu0 0
        %852 = vmatpush1.bf16.xpose.msra.mxu0 0
        %853 = vmatprep.subr.bf16.mxu0 0
        %854 = vmatpush1.bf16.xpose.msra.mxu0 0
        %855 = vmatprep.subr.bf16.mxu0 0
        %856 = vmatpush1.bf16.xpose.msra.mxu0 0
        %857 = vmatprep.subr.bf16.mxu0 0
        %858 = vmatpush1.bf16.xpose.msra.mxu0 0
        %859 = vmatprep.subr.bf16.mxu0 0
        %860 = vmatpush1.bf16.xpose.msra.mxu0 0
        %861 = vmatprep.subr.bf16.mxu0 0
        %862 = vmatpush1.bf16.xpose.msra.mxu0 0
        %863 = vmatprep.subr.bf16.mxu0 0
        %864 = vmatpush1.bf16.xpose.msra.mxu0 0
        %865 = vmatprep.subr.bf16.mxu0 0
        %866 = vmatpush1.bf16.xpose.msra.mxu0 0
        %867 = vmatprep.subr.bf16.mxu0 0
        %868 = vmatpush1.bf16.xpose.msra.mxu0 0
        %869 = vmatprep.subr.bf16.mxu0 0
        %870 = vmatpush1.bf16.xpose.msra.mxu0 0
        %871 = vmatprep.subr.bf16.mxu0 0
        %872 = vmatpush1.bf16.xpose.msra.mxu0 0
        %873 = vmatprep.subr.bf16.mxu0 0
        %874 = vmatpush1.bf16.xpose.msra.mxu0 0
        %875 = vmatprep.subr.bf16.mxu0 0
        %876 = vmatpush1.bf16.xpose.msra.mxu0 0
        %877 = vmatprep.subr.bf16.mxu0 0
        %878 = vmatpush1.bf16.xpose.msra.mxu0 0
        %879 = vmatprep.subr.bf16.mxu0 0
        %880 = vmatpush1.bf16.xpose.msra.mxu0 0
        %881 = vmatprep.mubr.bf16.mxu0 0
        %882 = vmatmul.mubr.bf16.gmra.mrb[0].mxu0 %v844
        %v883 = vpop.f32.mrb[0].mxu0
        %v884 = vadd.f32 %v690, %v883
        %v885 = vpop.f32.mrb[0].mxu0
        %v886 = vpop.f32.mrb[0].mxu0
        %v887 = vpop.f32.mrb[0].mxu0
        %888 = vdwg.mxu0
        %v889 = vsel %vm695, %v737, -inf
        %890 = vmax.xlane.f32.xlu0 %v889
        %v891 = vpop.xlane.xlu0 %890
        %v892 = vsel %vm695, %v786, -inf
        %893 = vmax.xlane.f32.xlu0 %v892
        %v894 = vpop.xlane.xlu0 %893
        %v895 = vsel %vm695, %v835, -inf
        %896 = vmax.xlane.f32.xlu0 %v895
        %v897 = vpop.xlane.xlu0 %896
        %v898 = vsel %vm695, %v884, -inf
        %899 = vmax.xlane.f32.xlu0 %v898
        %v900 = vpop.xlane.xlu0 %899
        %v901 = vsub.f32 %v737, %v891
        %v902 = vsub.f32 %v786, %v894
        %v903 = vsub.f32 %v835, %v897
        %v904 = vsub.f32 %v884, %v900
        %v905 = vmul.f32 %v901, 1.442695
        %v906 = vpow.pop %v905
        %v907 = vmul.f32 %v902, 1.442695
        %v908 = vpow.pop %v907
        %v909 = vmul.f32 %v903, 1.442695
        %v910 = vpow.pop %v909
        %v911 = vmul.f32 %v904, 1.442695
        %v912 = vpow.pop %v911
        %v913 = vsel %vm695, %v906, 0.0
        %914 = vadd.xlane.f32.xlu0 %v913
        %v915 = vpop.xlane.xlu0 %914
        %v916 = vsel %vm695, %v908, 0.0
        %917 = vadd.xlane.f32.xlu0 %v916
        %v918 = vpop.xlane.xlu0 %917
        %v919 = vsel %vm695, %v910, 0.0
        %920 = vadd.xlane.f32.xlu0 %v919
        %v921 = vpop.xlane.xlu0 %920
        %v922 = vsel %vm695, %v912, 0.0
        %923 = vadd.xlane.f32.xlu0 %v922
        %v924 = vpop.xlane.xlu0 %923
        %v925 = vrcp.pop %v915
        %v926 = vrcp.pop %v918
        %v927 = vrcp.pop %v921
        %v928 = vrcp.pop %v924
        %v929 = vmul.f32 %v906, %v925
        %v930 = vmul.f32 %v908, %v926
        %v931 = vmul.f32 %v910, %v927
        %v932 = vmul.f32 %v912, %v928
        %v933 = vpack.c.bf16 %v929, %v929
        %v934 = vpack.c.bf16 %v930, %v930
        %v935 = vpack.c.bf16 %v931, %v931
        %v936 = vpack.c.bf16 %v932, %v932
        %937 = vrot.lane.b32.xlu0 %v682, 64
        %v938 = vpop.permute.xlu0 %937
        %v940 = vsel %vm695, %v933, 0
        %vm942 = vcmask 1043456
        %v944 = vsel %vm942, %v938, 0
        %946 = vmatprep.subr.bf16.mxu0 0
        %947 = vmatpush1.bf16.msra.mxu0 %v944
        %948 = vmatprep.subr.bf16.mxu0 0
        %949 = vmatpush1.bf16.msra.mxu0 0
        %950 = vmatprep.subr.bf16.mxu0 0
        %951 = vmatpush1.bf16.msra.mxu0 0
        %952 = vmatprep.subr.bf16.mxu0 0
        %953 = vmatpush1.bf16.msra.mxu0 0
        %954 = vmatprep.subr.bf16.mxu0 0
        %955 = vmatpush1.bf16.msra.mxu0 0
        %956 = vmatprep.subr.bf16.mxu0 0
        %957 = vmatpush1.bf16.msra.mxu0 0
        %958 = vmatprep.subr.bf16.mxu0 0
        %959 = vmatpush1.bf16.msra.mxu0 0
        %960 = vmatprep.subr.bf16.mxu0 0
        %961 = vmatpush1.bf16.msra.mxu0 0
        %962 = vmatprep.subr.bf16.mxu0 0
        %963 = vmatpush1.bf16.msra.mxu0 0
        %964 = vmatprep.subr.bf16.mxu0 0
        %965 = vmatpush1.bf16.msra.mxu0 0
        %966 = vmatprep.subr.bf16.mxu0 0
        %967 = vmatpush1.bf16.msra.mxu0 0
        %968 = vmatprep.subr.bf16.mxu0 0
        %969 = vmatpush1.bf16.msra.mxu0 0
        %970 = vmatprep.subr.bf16.mxu0 0
        %971 = vmatpush1.bf16.msra.mxu0 0
        %972 = vmatprep.subr.bf16.mxu0 0
        %973 = vmatpush1.bf16.msra.mxu0 0
        %974 = vmatprep.subr.bf16.mxu0 0
        %975 = vmatpush1.bf16.msra.mxu0 0
        %976 = vmatprep.subr.bf16.mxu0 0
        %977 = vmatpush1.bf16.msra.mxu0 0
        %978 = vmatprep.mubr.bf16.mxu0 0
        %979 = vmatmul.mubr.bf16.gmra.mrb[0].mxu0 %v940
        %v980 = vpop.f32.mrb[0].mxu0
        %v981 = vadd.f32 0.0, %v980
        %v982 = vpop.f32.mrb[0].mxu0
        %v983 = vpop.f32.mrb[0].mxu0
        %v984 = vpop.f32.mrb[0].mxu0
        %985 = vdwg.mxu0
        %986 = vrot.lane.b32.xlu0 %v683, 64
        %v987 = vpop.permute.xlu0 %986
        %v989 = vsel %vm695, %v934, 0
        %v992 = vsel %vm942, %v987, 0
        %994 = vmatprep.subr.bf16.mxu0 0
        %995 = vmatpush1.bf16.msra.mxu0 %v992
        %996 = vmatprep.subr.bf16.mxu0 0
        %997 = vmatpush1.bf16.msra.mxu0 0
        %998 = vmatprep.subr.bf16.mxu0 0
        %999 = vmatpush1.bf16.msra.mxu0 0
        %1000 = vmatprep.subr.bf16.mxu0 0
        %1001 = vmatpush1.bf16.msra.mxu0 0
        %1002 = vmatprep.subr.bf16.mxu0 0
        %1003 = vmatpush1.bf16.msra.mxu0 0
        %1004 = vmatprep.subr.bf16.mxu0 0
        %1005 = vmatpush1.bf16.msra.mxu0 0
        %1006 = vmatprep.subr.bf16.mxu0 0
        %1007 = vmatpush1.bf16.msra.mxu0 0
        %1008 = vmatprep.subr.bf16.mxu0 0
        %1009 = vmatpush1.bf16.msra.mxu0 0
        %1010 = vmatprep.subr.bf16.mxu0 0
        %1011 = vmatpush1.bf16.msra.mxu0 0
        %1012 = vmatprep.subr.bf16.mxu0 0
        %1013 = vmatpush1.bf16.msra.mxu0 0
        %1014 = vmatprep.subr.bf16.mxu0 0
        %1015 = vmatpush1.bf16.msra.mxu0 0
        %1016 = vmatprep.subr.bf16.mxu0 0
        %1017 = vmatpush1.bf16.msra.mxu0 0
        %1018 = vmatprep.subr.bf16.mxu0 0
        %1019 = vmatpush1.bf16.msra.mxu0 0
        %1020 = vmatprep.subr.bf16.mxu0 0
        %1021 = vmatpush1.bf16.msra.mxu0 0
        %1022 = vmatprep.subr.bf16.mxu0 0
        %1023 = vmatpush1.bf16.msra.mxu0 0
        %1024 = vmatprep.subr.bf16.mxu0 0
        %1025 = vmatpush1.bf16.msra.mxu0 0
        %1026 = vmatprep.mubr.bf16.mxu0 0
        %1027 = vmatmul.mubr.bf16.gmra.mrb[0].mxu0 %v989
        %v1028 = vpop.f32.mrb[0].mxu0
        %v1029 = vadd.f32 0.0, %v1028
        %v1030 = vpop.f32.mrb[0].mxu0
        %v1031 = vpop.f32.mrb[0].mxu0
        %v1032 = vpop.f32.mrb[0].mxu0
        %1033 = vdwg.mxu0
        %1034 = vrot.lane.b32.xlu0 %v684, 64
        %v1035 = vpop.permute.xlu0 %1034
        %v1037 = vsel %vm695, %v935, 0
        %v1040 = vsel %vm942, %v1035, 0
        %1042 = vmatprep.subr.bf16.mxu0 0
        %1043 = vmatpush1.bf16.msra.mxu0 %v1040
        %1044 = vmatprep.subr.bf16.mxu0 0
        %1045 = vmatpush1.bf16.msra.mxu0 0
        %1046 = vmatprep.subr.bf16.mxu0 0
        %1047 = vmatpush1.bf16.msra.mxu0 0
        %1048 = vmatprep.subr.bf16.mxu0 0
        %1049 = vmatpush1.bf16.msra.mxu0 0
        %1050 = vmatprep.subr.bf16.mxu0 0
        %1051 = vmatpush1.bf16.msra.mxu0 0
        %1052 = vmatprep.subr.bf16.mxu0 0
        %1053 = vmatpush1.bf16.msra.mxu0 0
        %1054 = vmatprep.subr.bf16.mxu0 0
        %1055 = vmatpush1.bf16.msra.mxu0 0
        %1056 = vmatprep.subr.bf16.mxu0 0
        %1057 = vmatpush1.bf16.msra.mxu0 0
        %1058 = vmatprep.subr.bf16.mxu0 0
        %1059 = vmatpush1.bf16.msra.mxu0 0
        %1060 = vmatprep.subr.bf16.mxu0 0
        %1061 = vmatpush1.bf16.msra.mxu0 0
        %1062 = vmatprep.subr.bf16.mxu0 0
        %1063 = vmatpush1.bf16.msra.mxu0 0
        %1064 = vmatprep.subr.bf16.mxu0 0
        %1065 = vmatpush1.bf16.msra.mxu0 0
        %1066 = vmatprep.subr.bf16.mxu0 0
        %1067 = vmatpush1.bf16.msra.mxu0 0
        %1068 = vmatprep.subr.bf16.mxu0 0
        %1069 = vmatpush1.bf16.msra.mxu0 0
        %1070 = vmatprep.subr.bf16.mxu0 0
        %1071 = vmatpush1.bf16.msra.mxu0 0
        %1072 = vmatprep.subr.bf16.mxu0 0
        %1073 = vmatpush1.bf16.msra.mxu0 0
        %1074 = vmatprep.mubr.bf16.mxu0 0
        %1075 = vmatmul.mubr.bf16.gmra.mrb[0].mxu0 %v1037
        %v1076 = vpop.f32.mrb[0].mxu0
        %v1077 = vadd.f32 0.0, %v1076
        %v1078 = vpop.f32.mrb[0].mxu0
        %v1079 = vpop.f32.mrb[0].mxu0
        %v1080 = vpop.f32.mrb[0].mxu0
        %1081 = vdwg.mxu0
        %1082 = vrot.lane.b32.xlu0 %v685, 64
        %v1083 = vpop.permute.xlu0 %1082
        %v1085 = vsel %vm695, %v936, 0
        %v1088 = vsel %vm942, %v1083, 0
        %1090 = vmatprep.subr.bf16.mxu0 0
        %1091 = vmatpush1.bf16.msra.mxu0 %v1088
        %1092 = vmatprep.subr.bf16.mxu0 0
        %1093 = vmatpush1.bf16.msra.mxu0 0
        %1094 = vmatprep.subr.bf16.mxu0 0
        %1095 = vmatpush1.bf16.msra.mxu0 0
        %1096 = vmatprep.subr.bf16.mxu0 0
        %1097 = vmatpush1.bf16.msra.mxu0 0
        %1098 = vmatprep.subr.bf16.mxu0 0
        %1099 = vmatpush1.bf16.msra.mxu0 0
        %1100 = vmatprep.subr.bf16.mxu0 0
        %1101 = vmatpush1.bf16.msra.mxu0 0
        %1102 = vmatprep.subr.bf16.mxu0 0
        %1103 = vmatpush1.bf16.msra.mxu0 0
        %1104 = vmatprep.subr.bf16.mxu0 0
        %1105 = vmatpush1.bf16.msra.mxu0 0
        %1106 = vmatprep.subr.bf16.mxu0 0
        %1107 = vmatpush1.bf16.msra.mxu0 0
        %1108 = vmatprep.subr.bf16.mxu0 0
        %1109 = vmatpush1.bf16.msra.mxu0 0
        %1110 = vmatprep.subr.bf16.mxu0 0
        %1111 = vmatpush1.bf16.msra.mxu0 0
        %1112 = vmatprep.subr.bf16.mxu0 0
        %1113 = vmatpush1.bf16.msra.mxu0 0
        %1114 = vmatprep.subr.bf16.mxu0 0
        %1115 = vmatpush1.bf16.msra.mxu0 0
        %1116 = vmatprep.subr.bf16.mxu0 0
        %1117 = vmatpush1.bf16.msra.mxu0 0
        %1118 = vmatprep.subr.bf16.mxu0 0
        %1119 = vmatpush1.bf16.msra.mxu0 0
        %1120 = vmatprep.subr.bf16.mxu0 0
        %1121 = vmatpush1.bf16.msra.mxu0 0
        %1122 = vmatprep.mubr.bf16.mxu0 0
        %1123 = vmatmul.mubr.bf16.gmra.mrb[0].mxu0 %v1085
        %v1124 = vpop.f32.mrb[0].mxu0
        %v1125 = vadd.f32 0.0, %v1124
        %v1126 = vpop.f32.mrb[0].mxu0
        %v1127 = vpop.f32.mrb[0].mxu0
        %v1128 = vpop.f32.mrb[0].mxu0
        %1129 = vdwg.mxu0
        %1131 = vrot.lane.b32.xlu0 %v1029, 8
        %v1132 = vpop.permute.xlu0 %1131
        %1135 = vrot.lane.b32.xlu0 %v1077, 16
        %v1136 = vpop.permute.xlu0 %1135
        %1139 = vrot.lane.b32.xlu0 %v1125, 24
        %v1140 = vpop.permute.xlu0 %1139
        %v1142 = vsel %vm695, %v981, %v1132
        %vm1143 = vcmask 130048
        %v1144 = vsel %vm1143, %v1142, %v1136
        %vm1145 = vcmask 195584
        %v1146 = vsel %vm1145, %v1144, %v1140
        %v1147 = vpack.c.bf16 %v1146, %v1146
        %v1148 = vld [vmem:[%s5] sm:$0xf]
        %v1149 = vld [vmem:[%s5 + $0x4] sm:$0xf]
        %v1150 = vld [vmem:[%s5 + $0x8] sm:$0xf]
        %v1151 = vld [vmem:[%s5 + $0xc] sm:$0xf]
        %v1152 = vld [vmem:[#allocation7] sm:$0x1]
        %v1154 = vlaneseq
        %v1155 = vshrl.u32 %v1154, 7
        %v1156 = vsub.s32 0, %v1155
        %v1157 = vrot.slane %v1152, %v1156
        %v1163 = vunpack.c.l.b16 %v1148
        %v1164 = vunpack.c.l.b16 %v1149
        %v1165 = vunpack.c.l.b16 %v1150
        %v1166 = vunpack.c.l.b16 %v1151
        %v1167 = vpack.c.b16 %v1164, %v1163
        %v1168 = vpack.c.b16 %v1166, %v1165
        %v1172 = vsel %vm613, %v1147, 0
        %1174 = vmatprep.subr.bf16.mxu0 0
        %1175 = vmatpush1.bf16.msra.mxu0 %v1167
        %1176 = vmatprep.subr.bf16.mxu0 0
        %1177 = vmatpush1.bf16.msra.mxu0 %v1168
        %1178 = vmatprep.subr.bf16.mxu0 0
        %1179 = vmatpush1.bf16.msra.mxu0 0
        %1180 = vmatprep.subr.bf16.mxu0 0
        %1181 = vmatpush1.bf16.msra.mxu0 0
        %1182 = vmatprep.subr.bf16.mxu0 0
        %1183 = vmatpush1.bf16.msra.mxu0 0
        %1184 = vmatprep.subr.bf16.mxu0 0
        %1185 = vmatpush1.bf16.msra.mxu0 0
        %1186 = vmatprep.subr.bf16.mxu0 0
        %1187 = vmatpush1.bf16.msra.mxu0 0
        %1188 = vmatprep.subr.bf16.mxu0 0
        %1189 = vmatpush1.bf16.msra.mxu0 0
        %1190 = vmatprep.subr.bf16.mxu0 0
        %1191 = vmatpush1.bf16.msra.mxu0 0
        %1192 = vmatprep.subr.bf16.mxu0 0
        %1193 = vmatpush1.bf16.msra.mxu0 0
        %1194 = vmatprep.subr.bf16.mxu0 0
        %1195 = vmatpush1.bf16.msra.mxu0 0
        %1196 = vmatprep.subr.bf16.mxu0 0
        %1197 = vmatpush1.bf16.msra.mxu0 0
        %1198 = vmatprep.subr.bf16.mxu0 0
        %1199 = vmatpush1.bf16.msra.mxu0 0
        %1200 = vmatprep.subr.bf16.mxu0 0
        %1201 = vmatpush1.bf16.msra.mxu0 0
        %1202 = vmatprep.subr.bf16.mxu0 0
        %1203 = vmatpush1.bf16.msra.mxu0 0
        %1204 = vmatprep.subr.bf16.mxu0 0
        %1205 = vmatpush1.bf16.msra.mxu0 0
        %1206 = vmatprep.mubr.bf16.mxu0 0
        %1207 = vmatmul.mubr.bf16.gmra.mrb[0].mxu0 %v1172
        %v1208 = vpop.f32.mrb[0].mxu0
        %v1209 = vadd.f32 %v1157, %v1208
        %v1210 = vpop.f32.mrb[0].mxu0
        %v1211 = vpop.f32.mrb[0].mxu0
        %v1212 = vpop.f32.mrb[0].mxu0
        %1213 = vdwg.mxu0
        %v1214 = vadd.f32 %v585, %v1209
        %v1215 = vld [vmem:[#allocation8] sm:$0x1]
        %v1216 = vld [vmem:[#allocation10] sm:$0x1]
        %v1217 = vsel %vm613, %v1214, 0.0
        %1218 = vadd.xlane.f32.xlu0 %v1217
        %v1219 = vpop.xlane.xlu0 %1218
        %v1220 = vrcp.pop 32.0
        %v1221 = vmul.f32 %v1219, %v1220
        %v1222 = vsub.f32 %v1214, %v1221
        %v1223 = vmul.f32 %v1222, %v1222
        %v1224 = vsel %vm613, %v1223, 0.0
        %1225 = vadd.xlane.f32.xlu0 %v1224
        %v1226 = vpop.xlane.xlu0 %1225
        %v1227 = vmul.f32 %v1226, %v1220
        %v1228 = vadd.f32 %v1227, 1e-05
        %v1229 = vrsqrt.pop %v1228
        %v1230 = vmul.f32 %v1222, %v1229
        %v1232 = vlaneseq
        %v1233 = vshrl.u32 %v1232, 7
        %v1234 = vsub.s32 0, %v1233
        %v1235 = vrot.slane %v1215, %v1234
        %v1237 = vmul.f32 %v1230, %v1235
        %v1239 = vlaneseq
        %v1240 = vshrl.u32 %v1239, 7
        %v1241 = vsub.s32 0, %v1240
        %v1242 = vrot.slane %v1216, %v1241
        %v1244 = vadd.f32 %v1237, %v1242
        %v1245 = vpack.c.bf16 %v1244, %v1244
        %v1246 = vld [vmem:[%s9] sm:$0xf]
        %v1247 = vld [vmem:[%s9 + $0x4] sm:$0xf]
        %v1248 = vld [vmem:[%s9 + $0x8] sm:$0xf]
        %v1249 = vld [vmem:[%s9 + $0xc] sm:$0xf]
        %v1250 = vld [vmem:[%s10] sm:$0x1]
        %v1252 = vlaneseq
        %v1253 = vshrl.u32 %v1252, 7
        %v1254 = vsub.s32 0, %v1253
        %v1255 = vrot.slane %v1250, %v1254
        %v1261 = vunpack.c.l.b16 %v1246
        %v1262 = vunpack.c.l.b16 %v1247
        %v1263 = vunpack.c.l.b16 %v1248
        %v1264 = vunpack.c.l.b16 %v1249
        %v1265 = vpack.c.b16 %v1262, %v1261
        %v1266 = vpack.c.b16 %v1264, %v1263
        %v1270 = vsel %vm613, %v1245, 0
        %1272 = vmatprep.subr.bf16.mxu0 0
        %1273 = vmatpush1.bf16.msra.mxu0 %v1265
        %1274 = vmatprep.subr.bf16.mxu0 0
        %1275 = vmatpush1.bf16.msra.mxu0 %v1266
        %1276 = vmatprep.subr.bf16.mxu0 0
        %1277 = vmatpush1.bf16.msra.mxu0 0
        %1278 = vmatprep.subr.bf16.mxu0 0
        %1279 = vmatpush1.bf16.msra.mxu0 0
        %1280 = vmatprep.subr.bf16.mxu0 0
        %1281 = vmatpush1.bf16.msra.mxu0 0
        %1282 = vmatprep.subr.bf16.mxu0 0
        %1283 = vmatpush1.bf16.msra.mxu0 0
        %1284 = vmatprep.subr.bf16.mxu0 0
        %1285 = vmatpush1.bf16.msra.mxu0 0
        %1286 = vmatprep.subr.bf16.mxu0 0
        %1287 = vmatpush1.bf16.msra.mxu0 0
        %1288 = vmatprep.subr.bf16.mxu0 0
        %1289 = vmatpush1.bf16.msra.mxu0 0
        %1290 = vmatprep.subr.bf16.mxu0 0
        %1291 = vmatpush1.bf16.msra.mxu0 0
        %1292 = vmatprep.subr.bf16.mxu0 0
        %1293 = vmatpush1.bf16.msra.mxu0 0
        %1294 = vmatprep.subr.bf16.mxu0 0
        %1295 = vmatpush1.bf16.msra.mxu0 0
        %1296 = vmatprep.subr.bf16.mxu0 0
        %1297 = vmatpush1.bf16.msra.mxu0 0
        %1298 = vmatprep.subr.bf16.mxu0 0
        %1299 = vmatpush1.bf16.msra.mxu0 0
        %1300 = vmatprep.subr.bf16.mxu0 0
        %1301 = vmatpush1.bf16.msra.mxu0 0
        %1302 = vmatprep.subr.bf16.mxu0 0
        %1303 = vmatpush1.bf16.msra.mxu0 0
        %1304 = vmatprep.mubr.bf16.mxu0 0
        %1305 = vmatmul.mubr.bf16.gmra.mrb[0].mxu0 %v1270
        %v1306 = vpop.f32.mrb[0].mxu0
        %v1307 = vadd.f32 %v1255, %v1306
        %v1308 = vpop.f32.mrb[0].mxu0
        %v1309 = vpop.f32.mrb[0].mxu0
        %v1310 = vpop.f32.mrb[0].mxu0
        %1311 = vdwg.mxu0
        %v1312 = vmax.f32 %v1307, 0.0
        %v1313 = vpack.c.bf16 %v1312, %v1312
        %v1314 = vld [vmem:[%s11] sm:$0xf]
        %v1315 = vld [vmem:[%s11 + $0x4] sm:$0xf]
        %v1316 = vld [vmem:[%s11 + $0x8] sm:$0xf]
        %v1317 = vld [vmem:[%s11 + $0xc] sm:$0xf]
        %v1318 = vld [vmem:[%s11 + $0x10] sm:$0xf]
        %v1319 = vld [vmem:[%s11 + $0x14] sm:$0xf]
        %v1320 = vld [vmem:[%s11 + $0x18] sm:$0xf]
        %v1321 = vld [vmem:[%s11 + $0x1c] sm:$0xf]
        %v1322 = vld [vmem:[%s12] sm:$0x1]
        %v1324 = vlaneseq
        %v1325 = vshrl.u32 %v1324, 7
        %v1326 = vsub.s32 0, %v1325
        %v1327 = vrot.slane %v1322, %v1326
        %v1337 = vunpack.c.l.b16 %v1314
        %v1338 = vunpack.c.l.b16 %v1315
        %v1339 = vunpack.c.l.b16 %v1316
        %v1340 = vunpack.c.l.b16 %v1317
        %v1341 = vunpack.c.l.b16 %v1318
        %v1342 = vunpack.c.l.b16 %v1319
        %v1343 = vunpack.c.l.b16 %v1320
        %v1344 = vunpack.c.l.b16 %v1321
        %v1345 = vpack.c.b16 %v1338, %v1337
        %v1346 = vpack.c.b16 %v1340, %v1339
        %v1347 = vpack.c.b16 %v1342, %v1341
        %v1348 = vpack.c.b16 %v1344, %v1343
        %vm1353 = vcmask 523264
        %v1355 = vsel %vm1353, %v1313, 0
        %1357 = vmatprep.subr.bf16.mxu0 0
        %1358 = vmatpush1.bf16.msra.mxu0 %v1345
        %1359 = vmatprep.subr.bf16.mxu0 0
        %1360 = vmatpush1.bf16.msra.mxu0 %v1346
        %1361 = vmatprep.subr.bf16.mxu0 0
        %1362 = vmatpush1.bf16.msra.mxu0 %v1347
        %1363 = vmatprep.subr.bf16.mxu0 0
        %1364 = vmatpush1.bf16.msra.mxu0 %v1348
        %1365 = vmatprep.subr.bf16.mxu0 0
        %1366 = vmatpush1.bf16.msra.mxu0 0
        %1367 = vmatprep.subr.bf16.mxu0 0
        %1368 = vmatpush1.bf16.msra.mxu0 0
        %1369 = vmatprep.subr.bf16.mxu0 0
        %1370 = vmatpush1.bf16.msra.mxu0 0
        %1371 = vmatprep.subr.bf16.mxu0 0
        %1372 = vmatpush1.bf16.msra.mxu0 0
        %1373 = vmatprep.subr.bf16.mxu0 0
        %1374 = vmatpush1.bf16.msra.mxu0 0
        %1375 = vmatprep.subr.bf16.mxu0 0
        %1376 = vmatpush1.bf16.msra.mxu0 0
        %1377 = vmatprep.subr.bf16.mxu0 0
        %1378 = vmatpush1.bf16.msra.mxu0 0
        %1379 = vmatprep.subr.bf16.mxu0 0
        %1380 = vmatpush1.bf16.msra.mxu0 0
        %1381 = vmatprep.subr.bf16.mxu0 0
        %1382 = vmatpush1.bf16.msra.mxu0 0
        %1383 = vmatprep.subr.bf16.mxu0 0
        %1384 = vmatpush1.bf16.msra.mxu0 0
        %1385 = vmatprep.subr.bf16.mxu0 0
        %1386 = vmatpush1.bf16.msra.mxu0 0
        %1387 = vmatprep.subr.bf16.mxu0 0
        %1388 = vmatpush1.bf16.msra.mxu0 0
        %1389 = vmatprep.mubr.bf16.mxu0 0
        %1390 = vmatmul.mubr.bf16.gmra.mrb[0].mxu0 %v1355
        %v1391 = vpop.f32.mrb[0].mxu0
        %v1392 = vadd.f32 %v1327, %v1391
        %v1393 = vpop.f32.mrb[0].mxu0
        %v1394 = vpop.f32.mrb[0].mxu0
        %v1395 = vpop.f32.mrb[0].mxu0
        %1396 = vdwg.mxu0
        %v1397 = vadd.f32 %v1244, %v1392
        %v1398 = vld [vmem:[%s13] sm:$0x1]
        %v1399 = vld [vmem:[%s14] sm:$0x1]
        %v1400 = vsel %vm613, %v1397, 0.0
        %1401 = vadd.xlane.f32.xlu0 %v1400
        %v1402 = vpop.xlane.xlu0 %1401
        %v1403 = vmul.f32 %v1402, %v1220
        %v1404 = vsub.f32 %v1397, %v1403
        %v1405 = vmul.f32 %v1404, %v1404
        %v1406 = vsel %vm613, %v1405, 0.0
        %1407 = vadd.xlane.f32.xlu0 %v1406
        %v1408 = vpop.xlane.xlu0 %1407
        %v1409 = vmul.f32 %v1408, %v1220
        %v1410 = vadd.f32 %v1409, 1e-05
        %v1411 = vrsqrt.pop %v1410
        %v1412 = vmul.f32 %v1404, %v1411
        %v1414 = vlaneseq
        %v1415 = vshrl.u32 %v1414, 7
        %v1416 = vsub.s32 0, %v1415
        %v1417 = vrot.slane %v1398, %v1416
        %v1419 = vmul.f32 %v1412, %v1417
        %v1421 = vlaneseq
        %v1422 = vshrl.u32 %v1421, 7
        %v1423 = vsub.s32 0, %v1422
        %v1424 = vrot.slane %v1399, %v1423
        %v1426 = vadd.f32 %v1419, %v1424
        %1427 = vst.msk [vmem:[%s573] sm:$0xff] %vm613, %v1426
        %s1428 = sand.u32 %s379, 1
        %s1429 = scalar_lea.sflag [#allocation4], %s1428
        %s1430 = sand.u32 %s379, 1
        %s1431 = smul.addr %s1430, 8
        %s1432 = scalar_lea.vmem [#allocation11], %s1431
        // Predicated region
        $region101: #{tpu_custom_call.1} parent=79 // pred_check
          %p1433 = pneg %p389
        $region102: #{tpu_custom_call.1} parent=79 // pred_check_branch
          %1435 = sbr.rel (%p1433) target = $region104
        $region103: #{tpu_custom_call.1} parent=79 // pred_region
          %s1437 = ssub.s32 128, 128
          %1438 = vsyncadd %s1429, %s1437
          %s1439 = sadd.s32 %s37, %s36
          %s1440 = smul.addr %s1439, 128
          %s1441 = scalar_lea.hbm %s15, %s1440
          %s1443 = sshll.u32 %s1432, 4
          %s1444 = int_to_ptr.vmem [resolvable:$true] %s1443
          %1446 = dma.vmem_to_hbm [thread:$0]  %s1444, 128, %s1441, %s1429
        $region104: #{tpu_custom_call.1} parent=79 // pred_fallthru
          _
      $region80: #{tpu_custom_call.1} parent=5 // pred_fallthru
        _
      %p1447 = scmp.le.s32.totalorder 2, %s27
      // Predicated region
      $region105: #{tpu_custom_call.1} parent=5 // pred_check
        %p1448 = pneg %p1447
      $region106: #{tpu_custom_call.1} parent=5 // pred_check_branch
        %1450 = sbr.rel (%p1448) target = $region108
      $region107: #{tpu_custom_call.1} parent=5 // pred_region
        %s1451 = ssub.s32 %s27, 2
        // Predicated region
        $region109: #{tpu_custom_call.1} parent=107 // pred_check
          %p1452 = pneg %p395
        $region110: #{tpu_custom_call.1} parent=107 // pred_check_branch
          %1454 = sbr.rel (%p1452) target = $region112
        $region111: #{tpu_custom_call.1} parent=107 // pred_region
          %s1455 = sand.u32 %s380, 1
          %s1456 = scalar_lea.sflag [#allocation4], %s1455
          %s1457 = sand.u32 %s380, 1
          %s1458 = smul.addr %s1457, 8
          %s1459 = scalar_lea.vmem [#allocation11], %s1458
          %1460 = dma.done %s1456, 128
        $region112: #{tpu_custom_call.1} parent=107 // pred_fallthru
          _
      $region108: #{tpu_custom_call.1} parent=5 // pred_fallthru
        _
    $region6: #{tpu_custom_call.1} parent=1 // loop_footer
      %s31 = sadd.s32 1, %s27
    $region7: #{tpu_custom_call.1} parent=1 // loop_footer_branch
      %26 = sbr.rel target = $region3
    $region8: #{tpu_custom_call.1} parent=1 // loop_exit
      _
    %1461 = vsyncpa [#allocation3], 1
    %s1462 = scalar_lea.sflag [#allocation3], 1
    %1463 = vsyncpa %s1462, 1
    %1464 = vsyncpa [#allocation6], 1
    %1465 = vsyncpa [#allocation9], 1
    %1466 = vsyncpa [#allocation4], 1
    %s1467 = scalar_lea.sflag [#allocation4], 1
    %1468 = vsyncpa %s1467, 1

</llo_original>
